<compile_context>
chip_gen: v6e
topology: v6e:2x2x1
jax: 0.10.0
libtpu: 0.0.40
codegen_flags: <defaults>
</compile_context>

<pallas_src>
import functools

import jax
import jax.numpy as jnp
from jax.experimental import pallas as pl
from jax.experimental.pallas import tpu as pltpu


# ----------------------------------------------------------------------------
# Small helpers
# ----------------------------------------------------------------------------
_SQRT_HALF = 0.7071067811865476


def _round_up(x, m):
    return ((x + m - 1) // m) * m


def _gelu_exact(x):
    # Exact GELU (erf-based), matching torch.nn.GELU() default.  f32 math.
    return 0.5 * x * (1.0 + jax.lax.erf(x * _SQRT_HALF))


def _layernorm_f32(x, g, b, eps):
    mean = jnp.mean(x, axis=-1, keepdims=True)
    var = jnp.mean(jnp.square(x - mean), axis=-1, keepdims=True)
    return (x - mean) * jax.lax.rsqrt(var + eps) * g + b


# ----------------------------------------------------------------------------
# Pallas kernels
# ----------------------------------------------------------------------------
def _linear_kernel(x_ref, w_ref, b_ref, o_ref):
    """o = x @ w + b   (x/w bf16, f32 accumulation)."""
    y = jnp.dot(x_ref[...], w_ref[...], preferred_element_type=jnp.float32)
    y = y + b_ref[...].astype(jnp.float32)
    o_ref[...] = y.astype(o_ref.dtype)


def _encoder_layer_kernel(h_ref, ln1g_ref, ln1b_ref, wqkv_ref, bqkv_ref,
                          wo_ref, bo_ref, ln2g_ref, ln2b_ref,
                          w1_ref, b1_ref, w2_ref, b2_ref, o_ref,
                          *, n_heads, head_dim, seq_len, eps):
    """One full pre-LN ViT encoder layer for a single batch element.

    Everything stays in VMEM: LN1 -> fused QKV matmul -> per-head softmax
    attention (padded keys masked) -> output projection + residual -> LN2 ->
    MLP (dense-GELU-dense) + residual.
    Matmul operands bf16, accumulation + elementwise math in f32.
    """
    D = n_heads * head_dim
    x = h_ref[0].astype(jnp.float32)                       # (S_pad, D) residual

    # ---- LN1 + fused QKV projection ----------------------------------------
    xn = _layernorm_f32(x, ln1g_ref[...].astype(jnp.float32),
                        ln1b_ref[...].astype(jnp.float32), eps)
    qkv = jnp.dot(xn.astype(jnp.bfloat16), wqkv_ref[...],
                  preferred_element_type=jnp.float32)
    qkv = qkv + bqkv_ref[...].astype(jnp.float32)          # (S_pad, 3D)

    # ---- multi-head attention (heads split in-kernel, padded keys masked) --
    s_pad = x.shape[0]
    key_idx = jax.lax.broadcasted_iota(jnp.int32, (s_pad, s_pad), 1)
    key_mask = key_idx < seq_len
    scale = 1.0 / float(head_dim) ** 0.5
    qk_dims = (((1,), (1,)), ((), ()))                     # q @ k^T

    # Output projection accumulated per head: concat(heads) @ Wo
    # == sum_h  head_h @ Wo[h*Dh:(h+1)*Dh, :]   (keeps residual VMEM-resident).
    wo = wo_ref[...]
    h1 = bo_ref[...].astype(jnp.float32) + x
    for hd in range(n_heads):
        lo = hd * head_dim
        q = qkv[:, lo:lo + head_dim].astype(jnp.bfloat16)
        k = qkv[:, D + lo:D + lo + head_dim].astype(jnp.bfloat16)
        v = qkv[:, 2 * D + lo:2 * D + lo + head_dim].astype(jnp.bfloat16)

        s = jax.lax.dot_general(q, k, qk_dims,
                                preferred_element_type=jnp.float32) * scale
        s = jnp.where(key_mask, s, -1e30)
        s = s - jnp.max(s, axis=-1, keepdims=True)
        p = jnp.exp(s)
        denom = jnp.sum(p, axis=-1, keepdims=True)
        p = p * pl.reciprocal(denom, approx=True)          # EUP, ~free
        o_h = jnp.dot(p.astype(jnp.bfloat16), v,
                      preferred_element_type=jnp.float32)  # (S_pad, Dh)
        h1 = h1 + jnp.dot(o_h.astype(jnp.bfloat16), wo[lo:lo + head_dim, :],
                          preferred_element_type=jnp.float32)

    # ---- LN2 + MLP + residual -----------------------------------------------
    xn2 = _layernorm_f32(h1, ln2g_ref[...].astype(jnp.float32),
                         ln2b_ref[...].astype(jnp.float32), eps)
    m = jnp.dot(xn2.astype(jnp.bfloat16), w1_ref[...],
                preferred_element_type=jnp.float32)
    m = _gelu_exact(m + b1_ref[...].astype(jnp.float32))
    h2 = jnp.dot(m.astype(jnp.bfloat16), w2_ref[...],
                 preferred_element_type=jnp.float32)
    h2 = h2 + b2_ref[...].astype(jnp.float32) + h1

    o_ref[0] = h2.astype(o_ref.dtype)


def _pooler_kernel(x_ref, g_ref, b_ref, w_ref, pb_ref, o_ref, *, eps):
    """Final LN (CLS rows only) -> pooler dense -> tanh -> module GELU."""
    x = x_ref[...].astype(jnp.float32)
    xn = _layernorm_f32(x, g_ref[...].astype(jnp.float32),
                        b_ref[...].astype(jnp.float32), eps)
    y = jnp.dot(xn.astype(jnp.bfloat16), w_ref[...],
                preferred_element_type=jnp.float32)
    y = y + pb_ref[...].astype(jnp.float32)
    y = _gelu_exact(jnp.tanh(y))
    o_ref[...] = y.astype(o_ref.dtype)


# ----------------------------------------------------------------------------
# pallas_call wrappers
# ----------------------------------------------------------------------------
def pallas_linear_tiled(x, w, b, *, out_dtype=None):
    """Row-tiled x @ w + b with a parallel grid (used for patch embedding)."""
    M, K = x.shape
    N = w.shape[1]
    out_dtype = out_dtype or x.dtype
    tm = min(512, _round_up(M, 8))
    M_pad = _round_up(M, tm)
    if M_pad != M:
        x = jnp.pad(x, ((0, M_pad - M), (0, 0)))
    out = pl.pallas_call(
        _linear_kernel,
        out_shape=jax.ShapeDtypeStruct((M_pad, N), out_dtype),
        grid=(M_pad // tm,),
        in_specs=[pl.BlockSpec((tm, K), lambda i: (i, 0)),
                  pl.BlockSpec((K, N), lambda i: (0, 0)),
                  pl.BlockSpec((1, N), lambda i: (0, 0))],
        out_specs=pl.BlockSpec((tm, N), lambda i: (i, 0)),
        compiler_params=pltpu.CompilerParams(
            dimension_semantics=("parallel",)),
    )(x, w, b)
    return out[:M] if M_pad != M else out


def pallas_encoder_layer(h, layer, *, n_heads, seq_len, eps=1e-12):
    """One fused pallas_call per encoder layer; grid over batch (parallel)."""
    B, S_pad, D = h.shape
    head_dim = D // n_heads
    kernel = functools.partial(_encoder_layer_kernel, n_heads=n_heads,
                               head_dim=head_dim, seq_len=seq_len, eps=eps)

    def full_spec(arr):
        nd = arr.ndim
        return pl.BlockSpec(arr.shape, lambda b, _nd=nd: (0,) * _nd)

    args = (h, layer["ln1_g"], layer["ln1_b"], layer["wqkv"], layer["bqkv"],
            layer["wo"], layer["bo"], layer["ln2_g"], layer["ln2_b"],
            layer["w1"], layer["b1"], layer["w2"], layer["b2"])
    in_specs = [pl.BlockSpec((1, S_pad, D), lambda b: (b, 0, 0))]
    in_specs += [full_spec(a) for a in args[1:]]

    # TODO(synk): for very large MLP widths, add a K-axis grid with a
    # pl.when-gated f32 VMEM accumulator instead of whole weights in VMEM.
    return pl.pallas_call(
        kernel,
        out_shape=jax.ShapeDtypeStruct((B, S_pad, D), h.dtype),
        grid=(B,),
        in_specs=in_specs,
        out_specs=pl.BlockSpec((1, S_pad, D), lambda b: (b, 0, 0)),
        compiler_params=pltpu.CompilerParams(
            dimension_semantics=("parallel",),
            vmem_limit_bytes=48 * 1024 * 1024),
    )(*args)


def pallas_cls_pooler(cls_h, g, b, w, pb, *, eps=1e-12):
    return pl.pallas_call(
        functools.partial(_pooler_kernel, eps=eps),
        out_shape=jax.ShapeDtypeStruct(cls_h.shape, jnp.float32),
        in_specs=[pl.BlockSpec(memory_space=pltpu.MemorySpace.VMEM)] * 5,
        out_specs=pl.BlockSpec(memory_space=pltpu.MemorySpace.VMEM),
    )(cls_h, g, b, w, pb)


# ----------------------------------------------------------------------------
# Synthetic ViT backbone parameters (deterministic)
#   matmul weights in bf16 (MXU operands), LN params / biases in f32.
# ----------------------------------------------------------------------------
def init_params(key, *, channels, patch, hidden, n_layers, n_heads, mlp_dim,
                num_patches):
    def nrm(k, shape, scale=0.02, dtype=jnp.bfloat16):
        return (scale * jax.random.normal(k, shape, jnp.float32)).astype(dtype)

    keys = iter(jax.random.split(key, 8 + 8 * n_layers))
    p = {
        "patch_w": nrm(next(keys), (channels * patch * patch, hidden)),
        "patch_b": jnp.zeros((1, hidden), jnp.float32),
        "cls": nrm(next(keys), (1, 1, hidden), dtype=jnp.float32),
        "pos": nrm(next(keys), (1, num_patches + 1, hidden), dtype=jnp.float32),
        "final_ln_g": jnp.ones((1, hidden), jnp.float32),
        "final_ln_b": jnp.zeros((1, hidden), jnp.float32),
        "pool_w": nrm(next(keys), (hidden, hidden)),
        "pool_b": jnp.zeros((1, hidden), jnp.float32),
        "layers": [],
    }
    for _ in range(n_layers):
        p["layers"].append({
            "ln1_g": jnp.ones((1, hidden), jnp.float32),
            "ln1_b": jnp.zeros((1, hidden), jnp.float32),
            "wqkv": nrm(next(keys), (hidden, 3 * hidden)),   # fused Q|K|V
            "bqkv": jnp.zeros((1, 3 * hidden), jnp.float32),
            "wo": nrm(next(keys), (hidden, hidden)),
            "bo": jnp.zeros((1, hidden), jnp.float32),
            "ln2_g": jnp.ones((1, hidden), jnp.float32),
            "ln2_b": jnp.zeros((1, hidden), jnp.float32),
            "w1": nrm(next(keys), (hidden, mlp_dim)),
            "b1": jnp.zeros((1, mlp_dim), jnp.float32),
            "w2": nrm(next(keys), (mlp_dim, hidden)),
            "b2": jnp.zeros((1, hidden), jnp.float32),
        })
    return p


# ----------------------------------------------------------------------------
# Forward pass:  GELU( ViT(x)[1] )   where [1] == pooler output
# ----------------------------------------------------------------------------
def vit_encoder_forward(params, x, *, patch, n_heads):
    B, C, H, W = x.shape
    D = params["patch_w"].shape[1]
    nh, nw = H // patch, W // patch
    num_patches = nh * nw
    S = num_patches + 1
    S_pad = _round_up(S, 8)          # sublane-aligned sequence length

    # --- patch embedding: im2col (bf16 glue) + row-tiled Pallas matmul -------
    patches = (
        x.reshape(B, C, nh, patch, nw, patch)
        .transpose(0, 2, 4, 1, 3, 5)
        .reshape(B * num_patches, C * patch * patch)
        .astype(jnp.bfloat16)
    )
    emb = pallas_linear_tiled(patches, params["patch_w"], params["patch_b"])
    emb = emb.astype(jnp.float32).reshape(B, num_patches, D)

    # --- CLS token + position embeddings, pad sequence to S_pad --------------
    cls = jnp.broadcast_to(params["cls"], (B, 1, D))
    h = jnp.concatenate([cls, emb], axis=1) + params["pos"]      # (B, S, D) f32
    h = jnp.pad(h, ((0, 0), (0, S_pad - S), (0, 0))).astype(jnp.bfloat16)

    # --- transformer encoder: ONE fused pallas_call per layer ----------------
    for layer in params["layers"]:
        h = pallas_encoder_layer(h, layer, n_heads=n_heads, seq_len=S)

    # --- CLS slice FIRST, then fused final-LN + pooler(tanh) + module GELU ---
    cls_tok = h[:, 0, :]                                          # (B, D) bf16
    return pallas_cls_pooler(cls_tok, params["final_ln_g"], params["final_ln_b"],
                             params["pool_w"], params["pool_b"])


# ----------------------------------------------------------------------------
if __name__ == "__main__":
    B, C, H, W = 2, 4, 16, 16
    PATCH, HIDDEN, LAYERS, HEADS, MLP = 8, 32, 2, 2, 64
    NUM_PATCHES = (H // PATCH) * (W // PATCH)

    root = jax.random.PRNGKey(0)
    k_param, k_x = jax.random.split(root)
    params = init_params(
        k_param, channels=C, patch=PATCH, hidden=HIDDEN, n_layers=LAYERS,
        n_heads=HEADS, mlp_dim=MLP, num_patches=NUM_PATCHES,
    )
    x = jax.random.normal(k_x, (B, C, H, W), jnp.float32)

    fwd = jax.jit(functools.partial(vit_encoder_forward, patch=PATCH,
                                    n_heads=HEADS))
    out = fwd(params, x)
    out = jax.block_until_ready(out)
    assert out.shape == (B, HIDDEN) and out.dtype == jnp.float32
    print("KERNEL_OK")
</pallas_src>

<mosaic_0001>
module attributes {stable_mosaic.version = 11 : i64} {
  func.func @_linear_kernel(%arg0: i32, %arg1: memref<8x256xbf16, #tpu.memory_space<vmem>>, %arg2: memref<256x32xbf16, #tpu.memory_space<vmem>>, %arg3: memref<1x32xf32, #tpu.memory_space<vmem>>, %arg4: memref<8x32xbf16, #tpu.memory_space<vmem>>) attributes {dimension_semantics = [#tpu.dimension_semantics<parallel>], iteration_bounds = array<i64: 1>, scalar_prefetch = 0 : i64, scratch_operands = 0 : i64, tpu.core_type = #tpu.core_type<tc>, window_params = [{transform_indices = @transform_0, window_bounds = array<i64: 8, 256>}, {pipeline_mode = #tpu.pipeline_mode<synchronous>, transform_indices = @transform_1, window_bounds = array<i64: 256, 32>}, {pipeline_mode = #tpu.pipeline_mode<synchronous>, transform_indices = @transform_2, window_bounds = array<i64: 1, 32>}, {transform_indices = @transform_3, window_bounds = array<i64: 8, 32>}]} {
    %c0 = arith.constant 0 : index
    %c0_0 = arith.constant 0 : index
    %0 = vector.load %arg1[%c0, %c0_0] : memref<8x256xbf16, #tpu.memory_space<vmem>>, vector<8x256xbf16>
    %c0_1 = arith.constant 0 : index
    %c0_2 = arith.constant 0 : index
    %1 = vector.load %arg2[%c0_1, %c0_2] : memref<256x32xbf16, #tpu.memory_space<vmem>>, vector<256x32xbf16>
    %cst = arith.constant dense<0.000000e+00> : vector<8x32xf32>
    %2 = tpu.matmul %0, %1, %cst {dimension_numbers = #tpu.dot_dimension_numbers<[1], [0], [0], [1], [0, 0, 1, 1], [], []>} : vector<8x256xbf16>, vector<256x32xbf16>, vector<8x32xf32> -> vector<8x32xf32>
    %c0_3 = arith.constant 0 : index
    %c0_4 = arith.constant 0 : index
    %3 = vector.load %arg3[%c0_3, %c0_4] : memref<1x32xf32, #tpu.memory_space<vmem>>, vector<1x32xf32>
    %4 = vector.broadcast %3 : vector<1x32xf32> to vector<8x32xf32>
    %5 = arith.addf %2, %4 : vector<8x32xf32>
    %6 = arith.truncf %5 : vector<8x32xf32> to vector<8x32xbf16>
    %c0_5 = arith.constant 0 : index
    %c0_6 = arith.constant 0 : index
    %7 = vector.load %arg4[%c0_5, %c0_6] : memref<8x32xbf16, #tpu.memory_space<vmem>>, vector<8x32xbf16>
    tpu.vector_store %arg4[%c0_5, %c0_6], %6 {strides = array<i32>} : memref<8x32xbf16, #tpu.memory_space<vmem>>, vector<8x32xbf16>,
    return
  }
  func.func @transform_0(%arg0: i32) -> (i32, i32) {
    %c0_i32 = arith.constant 0 : i32
    %c0_i32_0 = arith.constant 0 : i32
    return %arg0, %c0_i32 : i32, i32
  }
  func.func @transform_1(%arg0: i32) -> (i32, i32) {
    %c0_i32 = arith.constant 0 : i32
    %c0_i32_0 = arith.constant 0 : i32
    %c0_i32_1 = arith.constant 0 : i32
    return %c0_i32, %c0_i32_0 : i32, i32
  }
  func.func @transform_2(%arg0: i32) -> (i32, i32) {
    %c0_i32 = arith.constant 0 : i32
    %c0_i32_0 = arith.constant 0 : i32
    %c0_i32_1 = arith.constant 0 : i32
    return %c0_i32, %c0_i32_0 : i32, i32
  }
  func.func @transform_3(%arg0: i32) -> (i32, i32) {
    %c0_i32 = arith.constant 0 : i32
    %c0_i32_0 = arith.constant 0 : i32
    return %arg0, %c0_i32 : i32, i32
  }
}

module attributes {stable_mosaic.version = 11 : i64} {
  func.func @_pooler_kernel(%arg0: memref<2x32xbf16, #tpu.memory_space<vmem>>, %arg1: memref<1x32xf32, #tpu.memory_space<vmem>>, %arg2: memref<1x32xf32, #tpu.memory_space<vmem>>, %arg3: memref<32x32xbf16, #tpu.memory_space<vmem>>, %arg4: memref<1x32xf32, #tpu.memory_space<vmem>>, %arg5: memref<2x32xf32, #tpu.memory_space<vmem>>) attributes {dimension_semantics = [], scalar_prefetch = 0 : i64, scratch_operands = 0 : i64, tpu.core_type = #tpu.core_type<tc>} {
    %c0 = arith.constant 0 : index
    %c0_0 = arith.constant 0 : index
    %0 = vector.load %arg0[%c0, %c0_0] : memref<2x32xbf16, #tpu.memory_space<vmem>>, vector<2x32xbf16>
    %1 = arith.extf %0 : vector<2x32xbf16> to vector<2x32xf32>
    %c0_1 = arith.constant 0 : index
    %c0_2 = arith.constant 0 : index
    %2 = vector.load %arg1[%c0_1, %c0_2] : memref<1x32xf32, #tpu.memory_space<vmem>>, vector<1x32xf32>
    %c0_3 = arith.constant 0 : index
    %c0_4 = arith.constant 0 : index
    %3 = vector.load %arg2[%c0_3, %c0_4] : memref<1x32xf32, #tpu.memory_space<vmem>>, vector<1x32xf32>
    %cst = arith.constant dense<0.000000e+00> : vector<2xf32>
    %4 = vector.multi_reduction <add>, %1, %cst [1] : vector<2x32xf32> to vector<2xf32>
    %5 = vector.shape_cast %4 : vector<2xf32> to vector<2x1xf32>
    %cst_5 = arith.constant 3.200000e+01 : f32
    %6 = vector.broadcast %cst_5 : f32 to vector<2x1xf32>
    %7 = arith.divf %5, %6 : vector<2x1xf32>
    %8 = vector.broadcast %7 : vector<2x1xf32> to vector<2x32xf32>
    %9 = arith.subf %1, %8 : vector<2x32xf32>
    %10 = arith.mulf %9, %9 : vector<2x32xf32>
    %cst_6 = arith.constant dense<0.000000e+00> : vector<2xf32>
    %11 = vector.multi_reduction <add>, %10, %cst_6 [1] : vector<2x32xf32> to vector<2xf32>
    %12 = vector.shape_cast %11 : vector<2xf32> to vector<2x1xf32>
    %cst_7 = arith.constant 3.200000e+01 : f32
    %13 = vector.broadcast %cst_7 : f32 to vector<2x1xf32>
    %14 = arith.divf %12, %13 : vector<2x1xf32>
    %15 = vector.broadcast %7 : vector<2x1xf32> to vector<2x32xf32>
    %16 = arith.subf %1, %15 : vector<2x32xf32>
    %cst_8 = arith.constant 9.99999996E-13 : f32
    %17 = vector.broadcast %cst_8 : f32 to vector<2x1xf32>
    %18 = arith.addf %14, %17 : vector<2x1xf32>
    %19 = math.rsqrt %18 : vector<2x1xf32>
    %20 = vector.broadcast %19 : vector<2x1xf32> to vector<2x32xf32>
    %21 = arith.mulf %16, %20 : vector<2x32xf32>
    %22 = vector.broadcast %2 : vector<1x32xf32> to vector<2x32xf32>
    %23 = arith.mulf %21, %22 : vector<2x32xf32>
    %24 = vector.broadcast %3 : vector<1x32xf32> to vector<2x32xf32>
    %25 = arith.addf %23, %24 : vector<2x32xf32>
    %26 = arith.truncf %25 : vector<2x32xf32> to vector<2x32xbf16>
    %c0_9 = arith.constant 0 : index
    %c0_10 = arith.constant 0 : index
    %27 = vector.load %arg3[%c0_9, %c0_10] : memref<32x32xbf16, #tpu.memory_space<vmem>>, vector<32x32xbf16>
    %cst_11 = arith.constant dense<0.000000e+00> : vector<2x32xf32>
    %28 = tpu.matmul %26, %27, %cst_11 {dimension_numbers = #tpu.dot_dimension_numbers<[1], [0], [0], [1], [0, 0, 1, 1], [], []>} : vector<2x32xbf16>, vector<32x32xbf16>, vector<2x32xf32> -> vector<2x32xf32>
    %c0_12 = arith.constant 0 : index
    %c0_13 = arith.constant 0 : index
    %29 = vector.load %arg4[%c0_12, %c0_13] : memref<1x32xf32, #tpu.memory_space<vmem>>, vector<1x32xf32>
    %30 = vector.broadcast %29 : vector<1x32xf32> to vector<2x32xf32>
    %31 = arith.addf %28, %30 : vector<2x32xf32>
    %32 = math.tanh %31 : vector<2x32xf32>
    %cst_14 = arith.constant 5.000000e-01 : f32
    %33 = vector.broadcast %cst_14 : f32 to vector<2x32xf32>
    %34 = arith.mulf %33, %32 : vector<2x32xf32>
    %cst_15 = arith.constant 0.707106769 : f32
    %35 = vector.broadcast %cst_15 : f32 to vector<2x32xf32>
    %36 = arith.mulf %32, %35 : vector<2x32xf32>
    %37 = math.erf %36 : vector<2x32xf32>
    %cst_16 = arith.constant 1.000000e+00 : f32
    %38 = vector.broadcast %cst_16 : f32 to vector<2x32xf32>
    %39 = arith.addf %38, %37 : vector<2x32xf32>
    %40 = arith.mulf %34, %39 : vector<2x32xf32>
    %c0_17 = arith.constant 0 : index
    %c0_18 = arith.constant 0 : index
    %41 = vector.load %arg5[%c0_17, %c0_18] : memref<2x32xf32, #tpu.memory_space<vmem>>, vector<2x32xf32>
    tpu.vector_store %arg5[%c0_17, %c0_18], %40 {strides = array<i32>} : memref<2x32xf32, #tpu.memory_space<vmem>>, vector<2x32xf32>,
    return
  }
}

module attributes {stable_mosaic.version = 11 : i64} {
  func.func @_encoder_layer_kernel(%arg0: i32, %arg1: memref<1x8x32xbf16, #tpu.memory_space<vmem>>, %arg2: memref<1x32xf32, #tpu.memory_space<vmem>>, %arg3: memref<1x32xf32, #tpu.memory_space<vmem>>, %arg4: memref<32x96xbf16, #tpu.memory_space<vmem>>, %arg5: memref<1x96xf32, #tpu.memory_space<vmem>>, %arg6: memref<32x32xbf16, #tpu.memory_space<vmem>>, %arg7: memref<1x32xf32, #tpu.memory_space<vmem>>, %arg8: memref<1x32xf32, #tpu.memory_space<vmem>>, %arg9: memref<1x32xf32, #tpu.memory_space<vmem>>, %arg10: memref<32x64xbf16, #tpu.memory_space<vmem>>, %arg11: memref<1x64xf32, #tpu.memory_space<vmem>>, %arg12: memref<64x32xbf16, #tpu.memory_space<vmem>>, %arg13: memref<1x32xf32, #tpu.memory_space<vmem>>, %arg14: memref<1x8x32xbf16, #tpu.memory_space<vmem>>) attributes {dimension_semantics = [#tpu.dimension_semantics<parallel>], iteration_bounds = array<i64: 2>, scalar_prefetch = 0 : i64, scratch_operands = 0 : i64, tpu.core_type = #tpu.core_type<tc>, window_params = [{transform_indices = @transform_0, window_bounds = array<i64: 1, 8, 32>}, {pipeline_mode = #tpu.pipeline_mode<synchronous>, transform_indices = @transform_1, window_bounds = array<i64: 1, 32>}, {pipeline_mode = #tpu.pipeline_mode<synchronous>, transform_indices = @transform_2, window_bounds = array<i64: 1, 32>}, {pipeline_mode = #tpu.pipeline_mode<synchronous>, transform_indices = @transform_3, window_bounds = array<i64: 32, 96>}, {pipeline_mode = #tpu.pipeline_mode<synchronous>, transform_indices = @transform_4, window_bounds = array<i64: 1, 96>}, {pipeline_mode = #tpu.pipeline_mode<synchronous>, transform_indices = @transform_5, window_bounds = array<i64: 32, 32>}, {pipeline_mode = #tpu.pipeline_mode<synchronous>, transform_indices = @transform_6, window_bounds = array<i64: 1, 32>}, {pipeline_mode = #tpu.pipeline_mode<synchronous>, transform_indices = @transform_7, window_bounds = array<i64: 1, 32>}, {pipeline_mode = #tpu.pipeline_mode<synchronous>, transform_indices = @transform_8, window_bounds = array<i64: 1, 32>}, {pipeline_mode = #tpu.pipeline_mode<synchronous>, transform_indices = @transform_9, window_bounds = array<i64: 32, 64>}, {pipeline_mode = #tpu.pipeline_mode<synchronous>, transform_indices = @transform_10, window_bounds = array<i64: 1, 64>}, {pipeline_mode = #tpu.pipeline_mode<synchronous>, transform_indices = @transform_11, window_bounds = array<i64: 64, 32>}, {pipeline_mode = #tpu.pipeline_mode<synchronous>, transform_indices = @transform_12, window_bounds = array<i64: 1, 32>}, {transform_indices = @transform_13, window_bounds = array<i64: 1, 8, 32>}]} {
    %c0 = arith.constant 0 : index
    %c0_0 = arith.constant 0 : index
    %c0_1 = arith.constant 0 : index
    %0 = vector.load %arg1[%c0, %c0_0, %c0_1] : memref<1x8x32xbf16, #tpu.memory_space<vmem>>, vector<1x8x32xbf16>
    %1 = vector.shape_cast %0 : vector<1x8x32xbf16> to vector<8x32xbf16>
    %2 = arith.extf %1 : vector<8x32xbf16> to vector<8x32xf32>
    %c0_2 = arith.constant 0 : index
    %c0_3 = arith.constant 0 : index
    %3 = vector.load %arg2[%c0_2, %c0_3] : memref<1x32xf32, #tpu.memory_space<vmem>>, vector<1x32xf32>
    %c0_4 = arith.constant 0 : index
    %c0_5 = arith.constant 0 : index
    %4 = vector.load %arg3[%c0_4, %c0_5] : memref<1x32xf32, #tpu.memory_space<vmem>>, vector<1x32xf32>
    %cst = arith.constant dense<0.000000e+00> : vector<8xf32>
    %5 = vector.multi_reduction <add>, %2, %cst [1] : vector<8x32xf32> to vector<8xf32>
    %6 = vector.shape_cast %5 : vector<8xf32> to vector<8x1xf32>
    %cst_6 = arith.constant 3.200000e+01 : f32
    %7 = vector.broadcast %cst_6 : f32 to vector<8x1xf32>
    %8 = arith.divf %6, %7 : vector<8x1xf32>
    %9 = vector.broadcast %8 : vector<8x1xf32> to vector<8x32xf32>
    %10 = arith.subf %2, %9 : vector<8x32xf32>
    %11 = arith.mulf %10, %10 : vector<8x32xf32>
    %cst_7 = arith.constant dense<0.000000e+00> : vector<8xf32>
    %12 = vector.multi_reduction <add>, %11, %cst_7 [1] : vector<8x32xf32> to vector<8xf32>
    %13 = vector.shape_cast %12 : vector<8xf32> to vector<8x1xf32>
    %cst_8 = arith.constant 3.200000e+01 : f32
    %14 = vector.broadcast %cst_8 : f32 to vector<8x1xf32>
    %15 = arith.divf %13, %14 : vector<8x1xf32>
    %16 = vector.broadcast %8 : vector<8x1xf32> to vector<8x32xf32>
    %17 = arith.subf %2, %16 : vector<8x32xf32>
    %cst_9 = arith.constant 9.99999996E-13 : f32
    %18 = vector.broadcast %cst_9 : f32 to vector<8x1xf32>
    %19 = arith.addf %15, %18 : vector<8x1xf32>
    %20 = math.rsqrt %19 : vector<8x1xf32>
    %21 = vector.broadcast %20 : vector<8x1xf32> to vector<8x32xf32>
    %22 = arith.mulf %17, %21 : vector<8x32xf32>
    %23 = vector.broadcast %3 : vector<1x32xf32> to vector<8x32xf32>
    %24 = arith.mulf %22, %23 : vector<8x32xf32>
    %25 = vector.broadcast %4 : vector<1x32xf32> to vector<8x32xf32>
    %26 = arith.addf %24, %25 : vector<8x32xf32>
    %27 = arith.truncf %26 : vector<8x32xf32> to vector<8x32xbf16>
    %c0_10 = arith.constant 0 : index
    %c0_11 = arith.constant 0 : index
    %28 = vector.load %arg4[%c0_10, %c0_11] : memref<32x96xbf16, #tpu.memory_space<vmem>>, vector<32x96xbf16>
    %cst_12 = arith.constant dense<0.000000e+00> : vector<8x96xf32>
    %29 = tpu.matmul %27, %28, %cst_12 {dimension_numbers = #tpu.dot_dimension_numbers<[1], [0], [0], [1], [0, 0, 1, 1], [], []>} : vector<8x32xbf16>, vector<32x96xbf16>, vector<8x96xf32> -> vector<8x96xf32>
    %c0_13 = arith.constant 0 : index
    %c0_14 = arith.constant 0 : index
    %30 = vector.load %arg5[%c0_13, %c0_14] : memref<1x96xf32, #tpu.memory_space<vmem>>, vector<1x96xf32>
    %31 = vector.broadcast %30 : vector<1x96xf32> to vector<8x96xf32>
    %32 = arith.addf %29, %31 : vector<8x96xf32>
    %33 = tpu.iota {dimensions = array<i32: 1>} : vector<8x8xi32>
    %c5_i32 = arith.constant 5 : i32
    %34 = vector.broadcast %c5_i32 : i32 to vector<8x8xi32>
    %35 = arith.cmpi slt, %33, %34 : vector<8x8xi32>
    %c0_15 = arith.constant 0 : index
    %c0_16 = arith.constant 0 : index
    %36 = vector.load %arg6[%c0_15, %c0_16] : memref<32x32xbf16, #tpu.memory_space<vmem>>, vector<32x32xbf16>
    %c0_17 = arith.constant 0 : index
    %c0_18 = arith.constant 0 : index
    %37 = vector.load %arg7[%c0_17, %c0_18] : memref<1x32xf32, #tpu.memory_space<vmem>>, vector<1x32xf32>
    %38 = vector.broadcast %37 : vector<1x32xf32> to vector<8x32xf32>
    %39 = arith.addf %38, %2 : vector<8x32xf32>
    %40 = vector.extract_strided_slice %32 {offsets = [0, 0], sizes = [8, 16], strides = [1, 1]} : vector<8x96xf32> to vector<8x16xf32>
    %41 = arith.truncf %40 : vector<8x16xf32> to vector<8x16xbf16>
    %42 = vector.extract_strided_slice %32 {offsets = [0, 32], sizes = [8, 16], strides = [1, 1]} : vector<8x96xf32> to vector<8x16xf32>
    %43 = arith.truncf %42 : vector<8x16xf32> to vector<8x16xbf16>
    %44 = vector.extract_strided_slice %32 {offsets = [0, 64], sizes = [8, 16], strides = [1, 1]} : vector<8x96xf32> to vector<8x16xf32>
    %45 = arith.truncf %44 : vector<8x16xf32> to vector<8x16xbf16>
    %cst_19 = arith.constant dense<0.000000e+00> : vector<8x8xf32>
    %46 = tpu.matmul %41, %43, %cst_19 {dimension_numbers = #tpu.dot_dimension_numbers<[1], [1], [0], [0], [0, 0, 1, 0], [], []>} : vector<8x16xbf16>, vector<8x16xbf16>, vector<8x8xf32> -> vector<8x8xf32>
    %cst_20 = arith.constant 2.500000e-01 : f32
    %47 = vector.broadcast %cst_20 : f32 to vector<8x8xf32>
    %48 = arith.mulf %46, %47 : vector<8x8xf32>
    %cst_21 = arith.constant -1.000000e+30 : f32
    %49 = vector.broadcast %cst_21 : f32 to vector<8x8xf32>
    %50 = arith.select %35, %48, %49 : vector<8x8xi1>, vector<8x8xf32>
    %cst_22 = arith.constant dense<0xFF800000> : vector<8xf32>
    %51 = vector.multi_reduction <maximumf>, %50, %cst_22 [1] : vector<8x8xf32> to vector<8xf32>
    %52 = vector.shape_cast %51 : vector<8xf32> to vector<8x1xf32>
    %53 = vector.broadcast %52 : vector<8x1xf32> to vector<8x8xf32>
    %54 = arith.subf %50, %53 : vector<8x8xf32>
    %55 = math.exp %54 : vector<8x8xf32>
    %cst_23 = arith.constant dense<0.000000e+00> : vector<8xf32>
    %56 = vector.multi_reduction <add>, %55, %cst_23 [1] : vector<8x8xf32> to vector<8xf32>
    %57 = vector.shape_cast %56 : vector<8xf32> to vector<8x1xf32>
    %58 = tpu.reciprocal %57 {approx = true} : vector<8x1xf32> -> vector<8x1xf32>
    %59 = vector.broadcast %58 : vector<8x1xf32> to vector<8x8xf32>
    %60 = arith.mulf %55, %59 : vector<8x8xf32>
    %61 = arith.truncf %60 : vector<8x8xf32> to vector<8x8xbf16>
    %cst_24 = arith.constant dense<0.000000e+00> : vector<8x16xf32>
    %62 = tpu.matmul %61, %45, %cst_24 {dimension_numbers = #tpu.dot_dimension_numbers<[1], [0], [0], [1], [0, 0, 1, 1], [], []>} : vector<8x8xbf16>, vector<8x16xbf16>, vector<8x16xf32> -> vector<8x16xf32>
    %63 = arith.truncf %62 : vector<8x16xf32> to vector<8x16xbf16>
    %64 = vector.extract_strided_slice %36 {offsets = [0, 0], sizes = [16, 32], strides = [1, 1]} : vector<32x32xbf16> to vector<16x32xbf16>
    %cst_25 = arith.constant dense<0.000000e+00> : vector<8x32xf32>
    %65 = tpu.matmul %63, %64, %cst_25 {dimension_numbers = #tpu.dot_dimension_numbers<[1], [0], [0], [1], [0, 0, 1, 1], [], []>} : vector<8x16xbf16>, vector<16x32xbf16>, vector<8x32xf32> -> vector<8x32xf32>
    %66 = arith.addf %39, %65 : vector<8x32xf32>
    %67 = vector.extract_strided_slice %32 {offsets = [0, 16], sizes = [8, 16], strides = [1, 1]} : vector<8x96xf32> to vector<8x16xf32>
    %68 = arith.truncf %67 : vector<8x16xf32> to vector<8x16xbf16>
    %69 = vector.extract_strided_slice %32 {offsets = [0, 48], sizes = [8, 16], strides = [1, 1]} : vector<8x96xf32> to vector<8x16xf32>
    %70 = arith.truncf %69 : vector<8x16xf32> to vector<8x16xbf16>
    %71 = vector.extract_strided_slice %32 {offsets = [0, 80], sizes = [8, 16], strides = [1, 1]} : vector<8x96xf32> to vector<8x16xf32>
    %72 = arith.truncf %71 : vector<8x16xf32> to vector<8x16xbf16>
    %cst_26 = arith.constant dense<0.000000e+00> : vector<8x8xf32>
    %73 = tpu.matmul %68, %70, %cst_26 {dimension_numbers = #tpu.dot_dimension_numbers<[1], [1], [0], [0], [0, 0, 1, 0], [], []>} : vector<8x16xbf16>, vector<8x16xbf16>, vector<8x8xf32> -> vector<8x8xf32>
    %cst_27 = arith.constant 2.500000e-01 : f32
    %74 = vector.broadcast %cst_27 : f32 to vector<8x8xf32>
    %75 = arith.mulf %73, %74 : vector<8x8xf32>
    %cst_28 = arith.constant -1.000000e+30 : f32
    %76 = vector.broadcast %cst_28 : f32 to vector<8x8xf32>
    %77 = arith.select %35, %75, %76 : vector<8x8xi1>, vector<8x8xf32>
    %cst_29 = arith.constant dense<0xFF800000> : vector<8xf32>
    %78 = vector.multi_reduction <maximumf>, %77, %cst_29 [1] : vector<8x8xf32> to vector<8xf32>
    %79 = vector.shape_cast %78 : vector<8xf32> to vector<8x1xf32>
    %80 = vector.broadcast %79 : vector<8x1xf32> to vector<8x8xf32>
    %81 = arith.subf %77, %80 : vector<8x8xf32>
    %82 = math.exp %81 : vector<8x8xf32>
    %cst_30 = arith.constant dense<0.000000e+00> : vector<8xf32>
    %83 = vector.multi_reduction <add>, %82, %cst_30 [1] : vector<8x8xf32> to vector<8xf32>
    %84 = vector.shape_cast %83 : vector<8xf32> to vector<8x1xf32>
    %85 = tpu.reciprocal %84 {approx = true} : vector<8x1xf32> -> vector<8x1xf32>
    %86 = vector.broadcast %85 : vector<8x1xf32> to vector<8x8xf32>
    %87 = arith.mulf %82, %86 : vector<8x8xf32>
    %88 = arith.truncf %87 : vector<8x8xf32> to vector<8x8xbf16>
    %cst_31 = arith.constant dense<0.000000e+00> : vector<8x16xf32>
    %89 = tpu.matmul %88, %72, %cst_31 {dimension_numbers = #tpu.dot_dimension_numbers<[1], [0], [0], [1], [0, 0, 1, 1], [], []>} : vector<8x8xbf16>, vector<8x16xbf16>, vector<8x16xf32> -> vector<8x16xf32>
    %90 = arith.truncf %89 : vector<8x16xf32> to vector<8x16xbf16>
    %91 = vector.extract_strided_slice %36 {offsets = [16, 0], sizes = [16, 32], strides = [1, 1]} : vector<32x32xbf16> to vector<16x32xbf16>
    %cst_32 = arith.constant dense<0.000000e+00> : vector<8x32xf32>
    %92 = tpu.matmul %90, %91, %cst_32 {dimension_numbers = #tpu.dot_dimension_numbers<[1], [0], [0], [1], [0, 0, 1, 1], [], []>} : vector<8x16xbf16>, vector<16x32xbf16>, vector<8x32xf32> -> vector<8x32xf32>
    %93 = arith.addf %66, %92 : vector<8x32xf32>
    %c0_33 = arith.constant 0 : index
    %c0_34 = arith.constant 0 : index
    %94 = vector.load %arg8[%c0_33, %c0_34] : memref<1x32xf32, #tpu.memory_space<vmem>>, vector<1x32xf32>
    %c0_35 = arith.constant 0 : index
    %c0_36 = arith.constant 0 : index
    %95 = vector.load %arg9[%c0_35, %c0_36] : memref<1x32xf32, #tpu.memory_space<vmem>>, vector<1x32xf32>
    %cst_37 = arith.constant dense<0.000000e+00> : vector<8xf32>
    %96 = vector.multi_reduction <add>, %93, %cst_37 [1] : vector<8x32xf32> to vector<8xf32>
    %97 = vector.shape_cast %96 : vector<8xf32> to vector<8x1xf32>
    %cst_38 = arith.constant 3.200000e+01 : f32
    %98 = vector.broadcast %cst_38 : f32 to vector<8x1xf32>
    %99 = arith.divf %97, %98 : vector<8x1xf32>
    %100 = vector.broadcast %99 : vector<8x1xf32> to vector<8x32xf32>
    %101 = arith.subf %93, %100 : vector<8x32xf32>
    %102 = arith.mulf %101, %101 : vector<8x32xf32>
    %cst_39 = arith.constant dense<0.000000e+00> : vector<8xf32>
    %103 = vector.multi_reduction <add>, %102, %cst_39 [1] : vector<8x32xf32> to vector<8xf32>
    %104 = vector.shape_cast %103 : vector<8xf32> to vector<8x1xf32>
    %cst_40 = arith.constant 3.200000e+01 : f32
    %105 = vector.broadcast %cst_40 : f32 to vector<8x1xf32>
    %106 = arith.divf %104, %105 : vector<8x1xf32>
    %107 = vector.broadcast %99 : vector<8x1xf32> to vector<8x32xf32>
    %108 = arith.subf %93, %107 : vector<8x32xf32>
    %cst_41 = arith.constant 9.99999996E-13 : f32
    %109 = vector.broadcast %cst_41 : f32 to vector<8x1xf32>
    %110 = arith.addf %106, %109 : vector<8x1xf32>
    %111 = math.rsqrt %110 : vector<8x1xf32>
    %112 = vector.broadcast %111 : vector<8x1xf32> to vector<8x32xf32>
    %113 = arith.mulf %108, %112 : vector<8x32xf32>
    %114 = vector.broadcast %94 : vector<1x32xf32> to vector<8x32xf32>
    %115 = arith.mulf %113, %114 : vector<8x32xf32>
    %116 = vector.broadcast %95 : vector<1x32xf32> to vector<8x32xf32>
    %117 = arith.addf %115, %116 : vector<8x32xf32>
    %118 = arith.truncf %117 : vector<8x32xf32> to vector<8x32xbf16>
    %c0_42 = arith.constant 0 : index
    %c0_43 = arith.constant 0 : index
    %119 = vector.load %arg10[%c0_42, %c0_43] : memref<32x64xbf16, #tpu.memory_space<vmem>>, vector<32x64xbf16>
    %cst_44 = arith.constant dense<0.000000e+00> : vector<8x64xf32>
    %120 = tpu.matmul %118, %119, %cst_44 {dimension_numbers = #tpu.dot_dimension_numbers<[1], [0], [0], [1], [0, 0, 1, 1], [], []>} : vector<8x32xbf16>, vector<32x64xbf16>, vector<8x64xf32> -> vector<8x64xf32>
    %c0_45 = arith.constant 0 : index
    %c0_46 = arith.constant 0 : index
    %121 = vector.load %arg11[%c0_45, %c0_46] : memref<1x64xf32, #tpu.memory_space<vmem>>, vector<1x64xf32>
    %122 = vector.broadcast %121 : vector<1x64xf32> to vector<8x64xf32>
    %123 = arith.addf %120, %122 : vector<8x64xf32>
    %cst_47 = arith.constant 5.000000e-01 : f32
    %124 = vector.broadcast %cst_47 : f32 to vector<8x64xf32>
    %125 = arith.mulf %124, %123 : vector<8x64xf32>
    %cst_48 = arith.constant 0.707106769 : f32
    %126 = vector.broadcast %cst_48 : f32 to vector<8x64xf32>
    %127 = arith.mulf %123, %126 : vector<8x64xf32>
    %128 = math.erf %127 : vector<8x64xf32>
    %cst_49 = arith.constant 1.000000e+00 : f32
    %129 = vector.broadcast %cst_49 : f32 to vector<8x64xf32>
    %130 = arith.addf %129, %128 : vector<8x64xf32>
    %131 = arith.mulf %125, %130 : vector<8x64xf32>
    %132 = arith.truncf %131 : vector<8x64xf32> to vector<8x64xbf16>
    %c0_50 = arith.constant 0 : index
    %c0_51 = arith.constant 0 : index
    %133 = vector.load %arg12[%c0_50, %c0_51] : memref<64x32xbf16, #tpu.memory_space<vmem>>, vector<64x32xbf16>
    %cst_52 = arith.constant dense<0.000000e+00> : vector<8x32xf32>
    %134 = tpu.matmul %132, %133, %cst_52 {dimension_numbers = #tpu.dot_dimension_numbers<[1], [0], [0], [1], [0, 0, 1, 1], [], []>} : vector<8x64xbf16>, vector<64x32xbf16>, vector<8x32xf32> -> vector<8x32xf32>
    %c0_53 = arith.constant 0 : index
    %c0_54 = arith.constant 0 : index
    %135 = vector.load %arg13[%c0_53, %c0_54] : memref<1x32xf32, #tpu.memory_space<vmem>>, vector<1x32xf32>
    %136 = vector.broadcast %135 : vector<1x32xf32> to vector<8x32xf32>
    %137 = arith.addf %134, %136 : vector<8x32xf32>
    %138 = arith.addf %137, %93 : vector<8x32xf32>
    %139 = arith.truncf %138 : vector<8x32xf32> to vector<8x32xbf16>
    %c0_55 = arith.constant 0 : index
    %c0_56 = arith.constant 0 : index
    %c0_57 = arith.constant 0 : index
    %140 = vector.load %arg14[%c0_55, %c0_56, %c0_57] : memref<1x8x32xbf16, #tpu.memory_space<vmem>>, vector<1x8x32xbf16>
    %141 = vector.shape_cast %140 : vector<1x8x32xbf16> to vector<8x32xbf16>
    %142 = vector.shape_cast %139 : vector<8x32xbf16> to vector<1x8x32xbf16>
    tpu.vector_store %arg14[%c0_55, %c0_56, %c0_57], %142 {strides = array<i32>} : memref<1x8x32xbf16, #tpu.memory_space<vmem>>, vector<1x8x32xbf16>,
    return
  }
  func.func @transform_0(%arg0: i32) -> (i32, i32, i32) {
    %c0_i32 = arith.constant 0 : i32
    %c0_i32_0 = arith.constant 0 : i32
    %c0_i32_1 = arith.constant 0 : i32
    return %arg0, %c0_i32, %c0_i32_0 : i32, i32, i32
  }
  func.func @transform_1(%arg0: i32) -> (i32, i32) {
    %c0_i32 = arith.constant 0 : i32
    %c0_i32_0 = arith.constant 0 : i32
    %c0_i32_1 = arith.constant 0 : i32
    return %c0_i32, %c0_i32_0 : i32, i32
  }
  func.func @transform_2(%arg0: i32) -> (i32, i32) {
    %c0_i32 = arith.constant 0 : i32
    %c0_i32_0 = arith.constant 0 : i32
    %c0_i32_1 = arith.constant 0 : i32
    return %c0_i32, %c0_i32_0 : i32, i32
  }
  func.func @transform_3(%arg0: i32) -> (i32, i32) {
    %c0_i32 = arith.constant 0 : i32
    %c0_i32_0 = arith.constant 0 : i32
    %c0_i32_1 = arith.constant 0 : i32
    return %c0_i32, %c0_i32_0 : i32, i32
  }
  func.func @transform_4(%arg0: i32) -> (i32, i32) {
    %c0_i32 = arith.constant 0 : i32
    %c0_i32_0 = arith.constant 0 : i32
    %c0_i32_1 = arith.constant 0 : i32
    return %c0_i32, %c0_i32_0 : i32, i32
  }
  func.func @transform_5(%arg0: i32) -> (i32, i32) {
    %c0_i32 = arith.constant 0 : i32
    %c0_i32_0 = arith.constant 0 : i32
    %c0_i32_1 = arith.constant 0 : i32
    return %c0_i32, %c0_i32_0 : i32, i32
  }
  func.func @transform_6(%arg0: i32) -> (i32, i32) {
    %c0_i32 = arith.constant 0 : i32
    %c0_i32_0 = arith.constant 0 : i32
    %c0_i32_1 = arith.constant 0 : i32
    return %c0_i32, %c0_i32_0 : i32, i32
  }
  func.func @transform_7(%arg0: i32) -> (i32, i32) {
    %c0_i32 = arith.constant 0 : i32
    %c0_i32_0 = arith.constant 0 : i32
    %c0_i32_1 = arith.constant 0 : i32
    return %c0_i32, %c0_i32_0 : i32, i32
  }
  func.func @transform_8(%arg0: i32) -> (i32, i32) {
    %c0_i32 = arith.constant 0 : i32
    %c0_i32_0 = arith.constant 0 : i32
    %c0_i32_1 = arith.constant 0 : i32
    return %c0_i32, %c0_i32_0 : i32, i32
  }
  func.func @transform_9(%arg0: i32) -> (i32, i32) {
    %c0_i32 = arith.constant 0 : i32
    %c0_i32_0 = arith.constant 0 : i32
    %c0_i32_1 = arith.constant 0 : i32
    return %c0_i32, %c0_i32_0 : i32, i32
  }
  func.func @transform_10(%arg0: i32) -> (i32, i32) {
    %c0_i32 = arith.constant 0 : i32
    %c0_i32_0 = arith.constant 0 : i32
    %c0_i32_1 = arith.constant 0 : i32
    return %c0_i32, %c0_i32_0 : i32, i32
  }
  func.func @transform_11(%arg0: i32) -> (i32, i32) {
    %c0_i32 = arith.constant 0 : i32
    %c0_i32_0 = arith.constant 0 : i32
    %c0_i32_1 = arith.constant 0 : i32
    return %c0_i32, %c0_i32_0 : i32, i32
  }
  func.func @transform_12(%arg0: i32) -> (i32, i32) {
    %c0_i32 = arith.constant 0 : i32
    %c0_i32_0 = arith.constant 0 : i32
    %c0_i32_1 = arith.constant 0 : i32
    return %c0_i32, %c0_i32_0 : i32, i32
  }
  func.func @transform_13(%arg0: i32) -> (i32, i32, i32) {
    %c0_i32 = arith.constant 0 : i32
    %c0_i32_0 = arith.constant 0 : i32
    %c0_i32_1 = arith.constant 0 : i32
    return %arg0, %c0_i32, %c0_i32_0 : i32, i32, i32
  }
}

</mosaic_0001>

<llo_original>
// kernel: vit_encoder_forward.7
$region0: #{vit_encoder_forward.7}
  #allocation0 [shape = 'u32[]', space=smem, size = 0x4, offset = 0x4, fixed_abs, tag = 'smem constant byte address 0x4 - core index']
  #allocation1 [shape = 'u32[144,128]{1,0:T(1,128)}', space=vmem, size = 0x12000, scoped, tag = 'internal scratch']
  %s0 = inlined_call_operand.vmem [shape: bf16[2,32], index: 0, kind: input, shape index: {}]
  %s1 = inlined_call_operand.vmem [shape: f32[1,32], index: 1, kind: input, shape index: {}]
  %s2 = inlined_call_operand.vmem [shape: f32[1,32], index: 2, kind: input, shape index: {}]
  %s3 = inlined_call_operand.vmem [shape: bf16[32,32], index: 3, kind: input, shape index: {}]
  %s4 = inlined_call_operand.vmem [shape: f32[1,32], index: 4, kind: input, shape index: {}]
  %s5 = inlined_call_operand.hbm [shape: f32[2,32], index: 5, kind: output, shape index: {}]
  %s6 = sld [smem:[#allocation0]]
  $region30: #{vit_encoder_forward.7} parent=0
    _
  %s8 = ssub.s32 1, %s6
  %s9 = scalar_select 0, %s8, %s6
  $region1: #{vit_encoder_forward.7} parent=0
    #allocation2 [shape = 'u8[1024]{0}', space=vmem, size = 0x400, scoped, tag = 'output window, operand 0, single buffered']
    #allocation3 [shape = 's32[1]{0}', space=sflag, size = 0x4, scoped, tag = 'scoped memory for vit_encoder_forward.7']
    %10 = vsyncpa [#allocation3], 0
    // Predicated region
    $region2: #{vit_encoder_forward.7} parent=1 // pred_check
      _
    $region3: #{vit_encoder_forward.7} parent=1 // pred_check_branch
      %12 = sbr.rel (0) target = $region5
    $region4: #{vit_encoder_forward.7} parent=1 // pred_region
      _
    $region5: #{vit_encoder_forward.7} parent=1 // pred_fallthru
      _
    // Predicated region
    $region6: #{vit_encoder_forward.7} parent=1 // pred_check
      _
    $region7: #{vit_encoder_forward.7} parent=1 // pred_check_branch
      %14 = sbr.rel (0) target = $region9
    $region8: #{vit_encoder_forward.7} parent=1 // pred_region
      _
    $region9: #{vit_encoder_forward.7} parent=1 // pred_fallthru
      _
    // Predicated region
    $region10: #{vit_encoder_forward.7} parent=1 // pred_check
      _
    $region11: #{vit_encoder_forward.7} parent=1 // pred_check_branch
      %16 = sbr.rel (0) target = $region13
    $region12: #{vit_encoder_forward.7} parent=1 // pred_region
      _
    $region13: #{vit_encoder_forward.7} parent=1 // pred_fallthru
      _
    // Predicated region
    $region14: #{vit_encoder_forward.7} parent=1 // pred_check
      _
    $region15: #{vit_encoder_forward.7} parent=1 // pred_check_branch
      %18 = sbr.rel (0) target = $region17
    $region16: #{vit_encoder_forward.7} parent=1 // pred_region
      _
    $region17: #{vit_encoder_forward.7} parent=1 // pred_fallthru
      _
    // Predicated region
    $region18: #{vit_encoder_forward.7} parent=1 // pred_check
      _
    $region19: #{vit_encoder_forward.7} parent=1 // pred_check_branch
      %20 = sbr.rel (0) target = $region21
    $region20: #{vit_encoder_forward.7} parent=1 // pred_region
      _
    $region21: #{vit_encoder_forward.7} parent=1 // pred_fallthru
      _
    %v22 = vld [vmem:[%s0] sm:$0x1]
    %v23 = vunpack.c.l.bf16 %v22
    %v24 = vld [vmem:[%s1] sm:$0x1]
    %v25 = vld [vmem:[%s2] sm:$0x1]
    %vm26 = vcmask 254976
    %v27 = vsel %vm26, %v23, 0.0
    %28 = vadd.xlane.f32.xlu0 %v27
    %v29 = vpop.xlane.xlu0 %28
    %v30 = vrcp.pop 32.0
    %v31 = vmul.f32 %v29, %v30
    %v32 = vsub.f32 %v23, %v31
    %v33 = vmul.f32 %v32, %v32
    %v34 = vsel %vm26, %v33, 0.0
    %35 = vadd.xlane.f32.xlu0 %v34
    %v36 = vpop.xlane.xlu0 %35
    %v37 = vmul.f32 %v36, %v30
    %v38 = vadd.f32 %v37, 1e-12
    %v39 = vrsqrt.pop %v38
    %v40 = vmul.f32 %v32, %v39
    %v42 = vlaneseq
    %v43 = vshrl.u32 %v42, 7
    %v44 = vsub.s32 0, %v43
    %v45 = vrot.slane %v24, %v44
    %v47 = vmul.f32 %v40, %v45
    %v49 = vlaneseq
    %v50 = vshrl.u32 %v49, 7
    %v51 = vsub.s32 0, %v50
    %v52 = vrot.slane %v25, %v51
    %v54 = vadd.f32 %v47, %v52
    %v55 = vpack.c.bf16 %v54, %v54
    %v56 = vld [vmem:[%s3] sm:$0xf]
    %v57 = vld [vmem:[%s3 + $0x4] sm:$0xf]
    %v58 = vld [vmem:[%s3 + $0x8] sm:$0xf]
    %v59 = vld [vmem:[%s3 + $0xc] sm:$0xf]
    %v60 = vld [vmem:[%s4] sm:$0x1]
    %v62 = vlaneseq
    %v63 = vshrl.u32 %v62, 7
    %v64 = vsub.s32 0, %v63
    %v65 = vrot.slane %v60, %v64
    %v71 = vunpack.c.l.b16 %v56
    %v72 = vunpack.c.l.b16 %v57
    %v73 = vunpack.c.l.b16 %v58
    %v74 = vunpack.c.l.b16 %v59
    %v75 = vpack.c.b16 %v72, %v71
    %v76 = vpack.c.b16 %v74, %v73
    %vm79 = vcmask 261120
    %v81 = vsel %vm79, %v55, 0
    %83 = vmatprep.subr.bf16.mxu0 0
    %84 = vmatpush1.bf16.msra.mxu0 0
    %85 = vmatprep.subr.bf16.mxu0 0
    %86 = vmatpush1.bf16.msra.mxu0 0
    %87 = vmatprep.subr.bf16.mxu0 0
    %88 = vmatpush1.bf16.msra.mxu0 0
    %89 = vmatprep.subr.bf16.mxu0 0
    %90 = vmatpush1.bf16.msra.mxu0 0
    %91 = vmatprep.subr.bf16.mxu0 0
    %92 = vmatpush1.bf16.msra.mxu0 0
    %93 = vmatprep.subr.bf16.mxu0 0
    %94 = vmatpush1.bf16.msra.mxu0 0
    %95 = vmatprep.subr.bf16.mxu0 0
    %96 = vmatpush1.bf16.msra.mxu0 %v76
    %97 = vmatprep.subr.bf16.mxu0 0
    %98 = vmatpush1.bf16.msra.mxu0 %v75
    %99 = vmatprep.subr.bf16.mxu0 0
    %100 = vmatpush2.bf16.msra.mxu0 0
    %101 = vmatprep.subr.bf16.mxu0 0
    %102 = vmatpush2.bf16.msra.mxu0 0
    %103 = vmatprep.subr.bf16.mxu0 0
    %104 = vmatpush2.bf16.msra.mxu0 0
    %105 = vmatprep.subr.bf16.mxu0 0
    %106 = vmatpush2.bf16.msra.mxu0 0
    %107 = vmatprep.subr.bf16.mxu0 0
    %108 = vmatpush2.bf16.msra.mxu0 0
    %109 = vmatprep.subr.bf16.mxu0 0
    %110 = vmatpush2.bf16.msra.mxu0 0
    %111 = vmatprep.subr.bf16.mxu0 0
    %112 = vmatpush2.bf16.msra.mxu0 0
    %113 = vmatprep.subr.bf16.mxu0 0
    %114 = vmatpush2.bf16.msra.mxu0 0
    %115 = vmatprep.mubr.bf16.mxu0 0
    %116 = vmatmul.mubr.bf16.gmra.mxu0 %v81
    %v117 = vpop.f32.mrf.mxu0
    %v118 = vadd.f32 %v65, %v117
    %v119 = vpop.f32.mrf.mxu0
    %v120 = vpop.f32.mrf.mxu0
    %v121 = vpop.f32.mrf.mxu0
    %122 = vdwg.mxu0
    %v123 = vtanh.pop %v118
    %v124 = vmul.f32 %v123, 0.5
    %v125 = vmul.f32 %v123, 0.70710677
    %v126 = verf.f32.pop %v125
    %v127 = vadd.f32 %v126, 1.0
    %v128 = vmul.f32 %v124, %v127
    %129 = vst.msk [vmem:[#allocation2] sm:$0x3] %vm26, %v128
    // Predicated region
    $region22: #{vit_encoder_forward.7} parent=1 // pred_check
      _
    $region23: #{vit_encoder_forward.7} parent=1 // pred_check_branch
      %131 = sbr.rel (0) target = $region25
    $region24: #{vit_encoder_forward.7} parent=1 // pred_region
      %s133 = ssub.s32 32, 32
      %134 = vsyncadd [#allocation3], %s133
      %s136 = sshll.u32 [#allocation2], 4
      %s137 = int_to_ptr.vmem [resolvable:$true] %s136
      %139 = dma.vmem_to_hbm [thread:$0]  %s137, 32, %s5, [#allocation3]
    $region25: #{vit_encoder_forward.7} parent=1 // pred_fallthru
      _
    // Predicated region
    $region26: #{vit_encoder_forward.7} parent=1 // pred_check
      _
    $region27: #{vit_encoder_forward.7} parent=1 // pred_check_branch
      %141 = sbr.rel (0) target = $region29
    $region28: #{vit_encoder_forward.7} parent=1 // pred_region
      %142 = dma.done [#allocation3], 32
    $region29: #{vit_encoder_forward.7} parent=1 // pred_fallthru
      _
    %143 = vsyncpa [#allocation3], 1

// kernel: vit_encoder_forward.4
$region0: #{vit_encoder_forward.4}
  #allocation0 [shape = 'u32[]', space=smem, size = 0x4, offset = 0x4, fixed_abs, tag = 'smem constant byte address 0x4 - core index']
  #allocation1 [shape = 'u32[144,128]{1,0:T(1,128)}', space=vmem, size = 0x12000, scoped, tag = 'internal scratch']
  %s0 = inlined_call_operand.vmem [shape: bf16[8,256], index: 0, kind: input, shape index: {}]
  %s1 = inlined_call_operand.vmem [shape: bf16[256,32], index: 1, kind: input, shape index: {}]
  %s2 = inlined_call_operand.vmem [shape: f32[1,32], index: 2, kind: input, shape index: {}]
  %s3 = inlined_call_operand.vmem [shape: bf16[8,32], index: 3, kind: output, shape index: {}]
  %s4 = sld [smem:[#allocation0]]
  $region22: #{vit_encoder_forward.4} parent=0
    _
  %s6 = ssub.s32 1, %s4
  %s7 = scalar_select 0, %s6, %s4
  // Predicated region
  $region2: #{vit_encoder_forward.4} parent=0 // pred_check
    _
  $region3: #{vit_encoder_forward.4} parent=0 // pred_check_branch
    %9 = sbr.rel (0) target = $region5
  $region4: #{vit_encoder_forward.4} parent=0 // pred_region
    _
  $region5: #{vit_encoder_forward.4} parent=0 // pred_fallthru
    _
  // Predicated region
  $region6: #{vit_encoder_forward.4} parent=0 // pred_check
    _
  $region7: #{vit_encoder_forward.4} parent=0 // pred_check_branch
    %11 = sbr.rel (0) target = $region9
  $region8: #{vit_encoder_forward.4} parent=0 // pred_region
    _
  $region9: #{vit_encoder_forward.4} parent=0 // pred_fallthru
    _
  // Predicated region
  $region10: #{vit_encoder_forward.4} parent=0 // pred_check
    _
  $region11: #{vit_encoder_forward.4} parent=0 // pred_check_branch
    %13 = sbr.rel (0) target = $region13
  $region12: #{vit_encoder_forward.4} parent=0 // pred_region
    _
  $region13: #{vit_encoder_forward.4} parent=0 // pred_fallthru
    _
  %v15 = vld [vmem:[%s0] sm:$0xff]
  %v16 = vld [vmem:[%s1] sm:$0xf]
  %v17 = vld [vmem:[%s1 + $0x4] sm:$0xf]
  %v18 = vld [vmem:[%s1 + $0x8] sm:$0xf]
  %v19 = vld [vmem:[%s1 + $0xc] sm:$0xf]
  %v20 = vld [vmem:[%s1 + $0x10] sm:$0xf]
  %v21 = vld [vmem:[%s1 + $0x14] sm:$0xf]
  %v22 = vld [vmem:[%s1 + $0x18] sm:$0xf]
  %v23 = vld [vmem:[%s1 + $0x1c] sm:$0xf]
  %v24 = vld [vmem:[%s1 + $0x20] sm:$0xf]
  %v25 = vld [vmem:[%s1 + $0x24] sm:$0xf]
  %v26 = vld [vmem:[%s1 + $0x28] sm:$0xf]
  %v27 = vld [vmem:[%s1 + $0x2c] sm:$0xf]
  %v28 = vld [vmem:[%s1 + $0x30] sm:$0xf]
  %v29 = vld [vmem:[%s1 + $0x34] sm:$0xf]
  %v30 = vld [vmem:[%s1 + $0x38] sm:$0xf]
  %v31 = vld [vmem:[%s1 + $0x3c] sm:$0xf]
  %v32 = vld [vmem:[%s1 + $0x40] sm:$0xf]
  %v33 = vld [vmem:[%s1 + $0x44] sm:$0xf]
  %v34 = vld [vmem:[%s1 + $0x48] sm:$0xf]
  %v35 = vld [vmem:[%s1 + $0x4c] sm:$0xf]
  %v36 = vld [vmem:[%s1 + $0x50] sm:$0xf]
  %v37 = vld [vmem:[%s1 + $0x54] sm:$0xf]
  %v38 = vld [vmem:[%s1 + $0x58] sm:$0xf]
  %v39 = vld [vmem:[%s1 + $0x5c] sm:$0xf]
  %v40 = vld [vmem:[%s1 + $0x60] sm:$0xf]
  %v41 = vld [vmem:[%s1 + $0x64] sm:$0xf]
  %v42 = vld [vmem:[%s1 + $0x68] sm:$0xf]
  %v43 = vld [vmem:[%s1 + $0x6c] sm:$0xf]
  %v44 = vld [vmem:[%s1 + $0x70] sm:$0xf]
  %v45 = vld [vmem:[%s1 + $0x74] sm:$0xf]
  %v46 = vld [vmem:[%s1 + $0x78] sm:$0xf]
  %v47 = vld [vmem:[%s1 + $0x7c] sm:$0xf]
  %v48 = vld [vmem:[%s2] sm:$0x1]
  %v50 = vlaneseq
  %v51 = vshrl.u32 %v50, 7
  %v52 = vsub.s32 0, %v51
  %v53 = vrot.slane %v48, %v52
  %v56 = vunpack.c.l.b16 %v15
  %v57 = vunpack.c.h.b16 %v15
  %v58 = vpack.c.b16 %v56, %v56
  %v59 = vpack.c.b16 %v57, %v57
  %v94 = vunpack.c.l.b16 %v16
  %v95 = vunpack.c.l.b16 %v17
  %v96 = vunpack.c.l.b16 %v18
  %v97 = vunpack.c.l.b16 %v19
  %v98 = vunpack.c.l.b16 %v20
  %v99 = vunpack.c.l.b16 %v21
  %v100 = vunpack.c.l.b16 %v22
  %v101 = vunpack.c.l.b16 %v23
  %v102 = vunpack.c.l.b16 %v24
  %v103 = vunpack.c.l.b16 %v25
  %v104 = vunpack.c.l.b16 %v26
  %v105 = vunpack.c.l.b16 %v27
  %v106 = vunpack.c.l.b16 %v28
  %v107 = vunpack.c.l.b16 %v29
  %v108 = vunpack.c.l.b16 %v30
  %v109 = vunpack.c.l.b16 %v31
  %v110 = vunpack.c.l.b16 %v32
  %v111 = vunpack.c.l.b16 %v33
  %v112 = vunpack.c.l.b16 %v34
  %v113 = vunpack.c.l.b16 %v35
  %v114 = vunpack.c.l.b16 %v36
  %v115 = vunpack.c.l.b16 %v37
  %v116 = vunpack.c.l.b16 %v38
  %v117 = vunpack.c.l.b16 %v39
  %v118 = vunpack.c.l.b16 %v40
  %v119 = vunpack.c.l.b16 %v41
  %v120 = vunpack.c.l.b16 %v42
  %v121 = vunpack.c.l.b16 %v43
  %v122 = vunpack.c.l.b16 %v44
  %v123 = vunpack.c.l.b16 %v45
  %v124 = vunpack.c.l.b16 %v46
  %v125 = vunpack.c.l.b16 %v47
  %v126 = vpack.c.b16 %v95, %v94
  %v127 = vpack.c.b16 %v97, %v96
  %v128 = vpack.c.b16 %v99, %v98
  %v129 = vpack.c.b16 %v101, %v100
  %v130 = vpack.c.b16 %v103, %v102
  %v131 = vpack.c.b16 %v105, %v104
  %v132 = vpack.c.b16 %v107, %v106
  %v133 = vpack.c.b16 %v109, %v108
  %v134 = vpack.c.b16 %v111, %v110
  %v135 = vpack.c.b16 %v113, %v112
  %v136 = vpack.c.b16 %v115, %v114
  %v137 = vpack.c.b16 %v117, %v116
  %v138 = vpack.c.b16 %v119, %v118
  %v139 = vpack.c.b16 %v121, %v120
  %v140 = vpack.c.b16 %v123, %v122
  %v141 = vpack.c.b16 %v125, %v124
  %158 = vmatprep.subr.bf16.mxu0 0
  %159 = vmatpush1.bf16.msra.mxu0 %v133
  %160 = vmatprep.subr.bf16.mxu0 0
  %161 = vmatpush1.bf16.msra.mxu0 %v132
  %162 = vmatprep.subr.bf16.mxu0 0
  %163 = vmatpush1.bf16.msra.mxu0 %v131
  %164 = vmatprep.subr.bf16.mxu0 0
  %165 = vmatpush1.bf16.msra.mxu0 %v130
  %166 = vmatprep.subr.bf16.mxu0 0
  %167 = vmatpush1.bf16.msra.mxu0 %v129
  %168 = vmatprep.subr.bf16.mxu0 0
  %169 = vmatpush1.bf16.msra.mxu0 %v128
  %170 = vmatprep.subr.bf16.mxu0 0
  %171 = vmatpush1.bf16.msra.mxu0 %v127
  %172 = vmatprep.subr.bf16.mxu0 0
  %173 = vmatpush1.bf16.msra.mxu0 %v126
  %174 = vmatprep.subr.bf16.mxu0 0
  %175 = vmatpush2.bf16.msra.mxu0 %v141
  %176 = vmatprep.subr.bf16.mxu0 0
  %177 = vmatpush2.bf16.msra.mxu0 %v140
  %178 = vmatprep.subr.bf16.mxu0 0
  %179 = vmatpush2.bf16.msra.mxu0 %v139
  %180 = vmatprep.subr.bf16.mxu0 0
  %181 = vmatpush2.bf16.msra.mxu0 %v138
  %182 = vmatprep.subr.bf16.mxu0 0
  %183 = vmatpush2.bf16.msra.mxu0 %v137
  %184 = vmatprep.subr.bf16.mxu0 0
  %185 = vmatpush2.bf16.msra.mxu0 %v136
  %186 = vmatprep.subr.bf16.mxu0 0
  %187 = vmatpush2.bf16.msra.mxu0 %v135
  %188 = vmatprep.subr.bf16.mxu0 0
  %189 = vmatpush2.bf16.msra.mxu0 %v134
  %190 = vmatprep.mubr.bf16.mxu0 %v59
  %191 = vmatmul.mubr.bf16.gmra.mxu0 %v58
  %v192 = vpop.f32.mrf.mxu0
  %v193 = vadd.f32 %v53, %v192
  %v194 = vpop.f32.mrf.mxu0
  %v195 = vpop.f32.mrf.mxu0
  %v196 = vpop.f32.mrf.mxu0
  %197 = vdwg.mxu0
  %v198 = vpack.c.bf16 %v193, %v193
  %vm199 = vcmask 257024
  %200 = vst.msk [vmem:[%s3] sm:$0xf] %vm199, %v198
  // Predicated region
  $region14: #{vit_encoder_forward.4} parent=0 // pred_check
    _
  $region15: #{vit_encoder_forward.4} parent=0 // pred_check_branch
    %202 = sbr.rel (0) target = $region17
  $region16: #{vit_encoder_forward.4} parent=0 // pred_region
    _
  $region17: #{vit_encoder_forward.4} parent=0 // pred_fallthru
    _
  // Predicated region
  $region18: #{vit_encoder_forward.4} parent=0 // pred_check
    _
  $region19: #{vit_encoder_forward.4} parent=0 // pred_check_branch
    %204 = sbr.rel (0) target = $region21
  $region20: #{vit_encoder_forward.4} parent=0 // pred_region
    _
  $region21: #{vit_encoder_forward.4} parent=0 // pred_fallthru
    _

// kernel: vit_encoder_forward.5
$region0: #{vit_encoder_forward.5}
  #allocation0 [shape = 'u32[]', space=smem, size = 0x4, offset = 0x4, fixed_abs, tag = 'smem constant byte address 0x4 - core index']
  #allocation1 [shape = 'u32[144,128]{1,0:T(1,128)}', space=vmem, size = 0x12000, scoped, tag = 'internal scratch']
  %s0 = inlined_call_operand.vmem [shape: bf16[2,8,32], index: 0, kind: input, shape index: {}]
  %s1 = inlined_call_operand.vmem [shape: f32[1,32], index: 1, kind: input, shape index: {}]
  %s2 = inlined_call_operand.vmem [shape: f32[1,32], index: 2, kind: input, shape index: {}]
  %s3 = inlined_call_operand.vmem [shape: bf16[32,96], index: 3, kind: input, shape index: {}]
  %s4 = inlined_call_operand.vmem [shape: f32[1,96], index: 4, kind: input, shape index: {}]
  %s5 = inlined_call_operand.vmem [shape: bf16[32,32], index: 5, kind: input, shape index: {}]
  %s6 = inlined_call_operand.vmem [shape: f32[1,32], index: 6, kind: input, shape index: {}]
  %s7 = inlined_call_operand.vmem [shape: f32[1,32], index: 7, kind: input, shape index: {}]
  %s8 = inlined_call_operand.vmem [shape: f32[1,32], index: 8, kind: input, shape index: {}]
  %s9 = inlined_call_operand.vmem [shape: bf16[32,64], index: 9, kind: input, shape index: {}]
  %s10 = inlined_call_operand.vmem [shape: f32[1,64], index: 10, kind: input, shape index: {}]
  %s11 = inlined_call_operand.vmem [shape: bf16[64,32], index: 11, kind: input, shape index: {}]
  %s12 = inlined_call_operand.vmem [shape: f32[1,32], index: 12, kind: input, shape index: {}]
  %s13 = inlined_call_operand.vmem [shape: bf16[2,8,32], index: 13, kind: output, shape index: {}]
  %s14 = sld [smem:[#allocation0]]
  $region85: #{vit_encoder_forward.5} parent=0
    _
  %s16 = ssub.s32 1, %s14
  %s17 = scalar_select 0, %s16, %s14
  loop: start=0, step=1, limit=4
  $region2: #{vit_encoder_forward.5} parent=0 // loop_pre_header
    _
  $region3: #{vit_encoder_forward.5} parent=0 // loop_header
    %s19 = sphi 0, %s23
    %p20 = scmp.ge.s32.totalorder %s19, 4
    %s29 = sphi 0, %s31
    %s32 = sphi 0, %s29
    %s33 = sphi 0, %s32
    %s49 = sphi 0, %s33
    %s53 = sphi 0, %s53
    %s55 = sphi 0, %s53
    %s56 = sphi 0, %s55
    %s70 = sphi 0, %s56
    %s74 = sphi 0, %s74
    %s76 = sphi 0, %s74
    %s77 = sphi 0, %s76
    %s91 = sphi 0, %s77
    %s95 = sphi 0, %s95
    %s97 = sphi 0, %s95
    %s98 = sphi 0, %s97
    %s112 = sphi 0, %s98
    %s116 = sphi 0, %s116
    %s118 = sphi 0, %s116
    %s119 = sphi 0, %s118
    %s133 = sphi 0, %s119
    %s137 = sphi 0, %s137
    %s139 = sphi 0, %s137
    %s140 = sphi 0, %s139
    %s154 = sphi 0, %s140
    %s158 = sphi 0, %s158
    %s160 = sphi 0, %s158
    %s161 = sphi 0, %s160
    %s175 = sphi 0, %s161
    %s179 = sphi 0, %s179
    %s181 = sphi 0, %s179
    %s182 = sphi 0, %s181
    %s196 = sphi 0, %s182
    %s200 = sphi 0, %s200
    %s202 = sphi 0, %s200
    %s203 = sphi 0, %s202
    %s217 = sphi 0, %s203
    %s221 = sphi 0, %s221
    %s223 = sphi 0, %s221
    %s224 = sphi 0, %s223
    %s238 = sphi 0, %s224
    %s242 = sphi 0, %s242
    %s244 = sphi 0, %s242
    %s245 = sphi 0, %s244
    %s259 = sphi 0, %s245
    %s263 = sphi 0, %s263
    %s265 = sphi 0, %s263
    %s266 = sphi 0, %s265
    %s280 = sphi 0, %s266
    %s284 = sphi 0, %s284
    %s286 = sphi 0, %s284
    %s287 = sphi 0, %s286
    %s301 = sphi 0, %s287
    %s307 = sphi 0, %s309
    %s310 = sphi 0, %s307
    %s311 = sphi 0, %s310
    %s327 = sphi 0, %s311
  $region4: #{vit_encoder_forward.5} parent=0 // loop_header_branch
    %22 = sbr.rel (%p20) target = $region8
  $region5: #{vit_encoder_forward.5} parent=0 // loop_body
    %s24 = ssub.s32 %s19, 1
    %s25 = ssub.s32 %s19, 2
    %s26 = sadd.s32 %s19, 1
    %s27 = ssub.s32 %s19, %s26
    %p28 = scmp.eq.s32.totalorder %s27, 0
    %s30 = sadd.s32 %s29, 1
    %s31 = scalar_select %p28, %s29, %s30
    %p34 = pneg %p28
    %p35 = scmp.eq.s32.totalorder %s19, 1
    %p36 = por %p34, %p35
    %p37 = scmp.ne.s32.totalorder %s29, %s32
    %p38 = scmp.eq.s32.totalorder %s19, 0
    %p39 = por %p37, %p38
    %p40 = scmp.ne.s32.totalorder %s29, %s32
    %p41 = scmp.eq.s32.totalorder %s24, 1
    %p42 = por %p40, %p41
    %p43 = scmp.ne.s32.totalorder %s32, %s33
    %p44 = scmp.eq.s32.totalorder %s24, 0
    %p45 = por %p43, %p44
    %p46 = scmp.ne.s32.totalorder %s32, %s33
    %p47 = scmp.eq.s32.totalorder %s25, 1
    %p48 = por %p46, %p47
    %p50 = scmp.ne.s32.totalorder %s33, %s49
    %p51 = scmp.eq.s32.totalorder %s25, 0
    %p52 = por %p50, %p51
    %s54 = sadd.s32 %s53, 1
    %p57 = scmp.eq.s32.totalorder %s19, 1
    %p58 = scmp.ne.s32.totalorder %s53, %s55
    %p59 = scmp.eq.s32.totalorder %s19, 0
    %p60 = por %p58, %p59
    %p61 = scmp.ne.s32.totalorder %s53, %s55
    %p62 = scmp.eq.s32.totalorder %s24, 1
    %p63 = por %p61, %p62
    %p64 = scmp.ne.s32.totalorder %s55, %s56
    %p65 = scmp.eq.s32.totalorder %s24, 0
    %p66 = por %p64, %p65
    %p67 = scmp.ne.s32.totalorder %s55, %s56
    %p68 = scmp.eq.s32.totalorder %s25, 1
    %p69 = por %p67, %p68
    %p71 = scmp.ne.s32.totalorder %s56, %s70
    %p72 = scmp.eq.s32.totalorder %s25, 0
    %p73 = por %p71, %p72
    %s75 = sadd.s32 %s74, 1
    %p78 = scmp.eq.s32.totalorder %s19, 1
    %p79 = scmp.ne.s32.totalorder %s74, %s76
    %p80 = scmp.eq.s32.totalorder %s19, 0
    %p81 = por %p79, %p80
    %p82 = scmp.ne.s32.totalorder %s74, %s76
    %p83 = scmp.eq.s32.totalorder %s24, 1
    %p84 = por %p82, %p83
    %p85 = scmp.ne.s32.totalorder %s76, %s77
    %p86 = scmp.eq.s32.totalorder %s24, 0
    %p87 = por %p85, %p86
    %p88 = scmp.ne.s32.totalorder %s76, %s77
    %p89 = scmp.eq.s32.totalorder %s25, 1
    %p90 = por %p88, %p89
    %p92 = scmp.ne.s32.totalorder %s77, %s91
    %p93 = scmp.eq.s32.totalorder %s25, 0
    %p94 = por %p92, %p93
    %s96 = sadd.s32 %s95, 1
    %p99 = scmp.eq.s32.totalorder %s19, 1
    %p100 = scmp.ne.s32.totalorder %s95, %s97
    %p101 = scmp.eq.s32.totalorder %s19, 0
    %p102 = por %p100, %p101
    %p103 = scmp.ne.s32.totalorder %s95, %s97
    %p104 = scmp.eq.s32.totalorder %s24, 1
    %p105 = por %p103, %p104
    %p106 = scmp.ne.s32.totalorder %s97, %s98
    %p107 = scmp.eq.s32.totalorder %s24, 0
    %p108 = por %p106, %p107
    %p109 = scmp.ne.s32.totalorder %s97, %s98
    %p110 = scmp.eq.s32.totalorder %s25, 1
    %p111 = por %p109, %p110
    %p113 = scmp.ne.s32.totalorder %s98, %s112
    %p114 = scmp.eq.s32.totalorder %s25, 0
    %p115 = por %p113, %p114
    %s117 = sadd.s32 %s116, 1
    %p120 = scmp.eq.s32.totalorder %s19, 1
    %p121 = scmp.ne.s32.totalorder %s116, %s118
    %p122 = scmp.eq.s32.totalorder %s19, 0
    %p123 = por %p121, %p122
    %p124 = scmp.ne.s32.totalorder %s116, %s118
    %p125 = scmp.eq.s32.totalorder %s24, 1
    %p126 = por %p124, %p125
    %p127 = scmp.ne.s32.totalorder %s118, %s119
    %p128 = scmp.eq.s32.totalorder %s24, 0
    %p129 = por %p127, %p128
    %p130 = scmp.ne.s32.totalorder %s118, %s119
    %p131 = scmp.eq.s32.totalorder %s25, 1
    %p132 = por %p130, %p131
    %p134 = scmp.ne.s32.totalorder %s119, %s133
    %p135 = scmp.eq.s32.totalorder %s25, 0
    %p136 = por %p134, %p135
    %s138 = sadd.s32 %s137, 1
    %p141 = scmp.eq.s32.totalorder %s19, 1
    %p142 = scmp.ne.s32.totalorder %s137, %s139
    %p143 = scmp.eq.s32.totalorder %s19, 0
    %p144 = por %p142, %p143
    %p145 = scmp.ne.s32.totalorder %s137, %s139
    %p146 = scmp.eq.s32.totalorder %s24, 1
    %p147 = por %p145, %p146
    %p148 = scmp.ne.s32.totalorder %s139, %s140
    %p149 = scmp.eq.s32.totalorder %s24, 0
    %p150 = por %p148, %p149
    %p151 = scmp.ne.s32.totalorder %s139, %s140
    %p152 = scmp.eq.s32.totalorder %s25, 1
    %p153 = por %p151, %p152
    %p155 = scmp.ne.s32.totalorder %s140, %s154
    %p156 = scmp.eq.s32.totalorder %s25, 0
    %p157 = por %p155, %p156
    %s159 = sadd.s32 %s158, 1
    %p162 = scmp.eq.s32.totalorder %s19, 1
    %p163 = scmp.ne.s32.totalorder %s158, %s160
    %p164 = scmp.eq.s32.totalorder %s19, 0
    %p165 = por %p163, %p164
    %p166 = scmp.ne.s32.totalorder %s158, %s160
    %p167 = scmp.eq.s32.totalorder %s24, 1
    %p168 = por %p166, %p167
    %p169 = scmp.ne.s32.totalorder %s160, %s161
    %p170 = scmp.eq.s32.totalorder %s24, 0
    %p171 = por %p169, %p170
    %p172 = scmp.ne.s32.totalorder %s160, %s161
    %p173 = scmp.eq.s32.totalorder %s25, 1
    %p174 = por %p172, %p173
    %p176 = scmp.ne.s32.totalorder %s161, %s175
    %p177 = scmp.eq.s32.totalorder %s25, 0
    %p178 = por %p176, %p177
    %s180 = sadd.s32 %s179, 1
    %p183 = scmp.eq.s32.totalorder %s19, 1
    %p184 = scmp.ne.s32.totalorder %s179, %s181
    %p185 = scmp.eq.s32.totalorder %s19, 0
    %p186 = por %p184, %p185
    %p187 = scmp.ne.s32.totalorder %s179, %s181
    %p188 = scmp.eq.s32.totalorder %s24, 1
    %p189 = por %p187, %p188
    %p190 = scmp.ne.s32.totalorder %s181, %s182
    %p191 = scmp.eq.s32.totalorder %s24, 0
    %p192 = por %p190, %p191
    %p193 = scmp.ne.s32.totalorder %s181, %s182
    %p194 = scmp.eq.s32.totalorder %s25, 1
    %p195 = por %p193, %p194
    %p197 = scmp.ne.s32.totalorder %s182, %s196
    %p198 = scmp.eq.s32.totalorder %s25, 0
    %p199 = por %p197, %p198
    %s201 = sadd.s32 %s200, 1
    %p204 = scmp.eq.s32.totalorder %s19, 1
    %p205 = scmp.ne.s32.totalorder %s200, %s202
    %p206 = scmp.eq.s32.totalorder %s19, 0
    %p207 = por %p205, %p206
    %p208 = scmp.ne.s32.totalorder %s200, %s202
    %p209 = scmp.eq.s32.totalorder %s24, 1
    %p210 = por %p208, %p209
    %p211 = scmp.ne.s32.totalorder %s202, %s203
    %p212 = scmp.eq.s32.totalorder %s24, 0
    %p213 = por %p211, %p212
    %p214 = scmp.ne.s32.totalorder %s202, %s203
    %p215 = scmp.eq.s32.totalorder %s25, 1
    %p216 = por %p214, %p215
    %p218 = scmp.ne.s32.totalorder %s203, %s217
    %p219 = scmp.eq.s32.totalorder %s25, 0
    %p220 = por %p218, %p219
    %s222 = sadd.s32 %s221, 1
    %p225 = scmp.eq.s32.totalorder %s19, 1
    %p226 = scmp.ne.s32.totalorder %s221, %s223
    %p227 = scmp.eq.s32.totalorder %s19, 0
    %p228 = por %p226, %p227
    %p229 = scmp.ne.s32.totalorder %s221, %s223
    %p230 = scmp.eq.s32.totalorder %s24, 1
    %p231 = por %p229, %p230
    %p232 = scmp.ne.s32.totalorder %s223, %s224
    %p233 = scmp.eq.s32.totalorder %s24, 0
    %p234 = por %p232, %p233
    %p235 = scmp.ne.s32.totalorder %s223, %s224
    %p236 = scmp.eq.s32.totalorder %s25, 1
    %p237 = por %p235, %p236
    %p239 = scmp.ne.s32.totalorder %s224, %s238
    %p240 = scmp.eq.s32.totalorder %s25, 0
    %p241 = por %p239, %p240
    %s243 = sadd.s32 %s242, 1
    %p246 = scmp.eq.s32.totalorder %s19, 1
    %p247 = scmp.ne.s32.totalorder %s242, %s244
    %p248 = scmp.eq.s32.totalorder %s19, 0
    %p249 = por %p247, %p248
    %p250 = scmp.ne.s32.totalorder %s242, %s244
    %p251 = scmp.eq.s32.totalorder %s24, 1
    %p252 = por %p250, %p251
    %p253 = scmp.ne.s32.totalorder %s244, %s245
    %p254 = scmp.eq.s32.totalorder %s24, 0
    %p255 = por %p253, %p254
    %p256 = scmp.ne.s32.totalorder %s244, %s245
    %p257 = scmp.eq.s32.totalorder %s25, 1
    %p258 = por %p256, %p257
    %p260 = scmp.ne.s32.totalorder %s245, %s259
    %p261 = scmp.eq.s32.totalorder %s25, 0
    %p262 = por %p260, %p261
    %s264 = sadd.s32 %s263, 1
    %p267 = scmp.eq.s32.totalorder %s19, 1
    %p268 = scmp.ne.s32.totalorder %s263, %s265
    %p269 = scmp.eq.s32.totalorder %s19, 0
    %p270 = por %p268, %p269
    %p271 = scmp.ne.s32.totalorder %s263, %s265
    %p272 = scmp.eq.s32.totalorder %s24, 1
    %p273 = por %p271, %p272
    %p274 = scmp.ne.s32.totalorder %s265, %s266
    %p275 = scmp.eq.s32.totalorder %s24, 0
    %p276 = por %p274, %p275
    %p277 = scmp.ne.s32.totalorder %s265, %s266
    %p278 = scmp.eq.s32.totalorder %s25, 1
    %p279 = por %p277, %p278
    %p281 = scmp.ne.s32.totalorder %s266, %s280
    %p282 = scmp.eq.s32.totalorder %s25, 0
    %p283 = por %p281, %p282
    %s285 = sadd.s32 %s284, 1
    %p288 = scmp.eq.s32.totalorder %s19, 1
    %p289 = scmp.ne.s32.totalorder %s284, %s286
    %p290 = scmp.eq.s32.totalorder %s19, 0
    %p291 = por %p289, %p290
    %p292 = scmp.ne.s32.totalorder %s284, %s286
    %p293 = scmp.eq.s32.totalorder %s24, 1
    %p294 = por %p292, %p293
    %p295 = scmp.ne.s32.totalorder %s286, %s287
    %p296 = scmp.eq.s32.totalorder %s24, 0
    %p297 = por %p295, %p296
    %p298 = scmp.ne.s32.totalorder %s286, %s287
    %p299 = scmp.eq.s32.totalorder %s25, 1
    %p300 = por %p298, %p299
    %p302 = scmp.ne.s32.totalorder %s287, %s301
    %p303 = scmp.eq.s32.totalorder %s25, 0
    %p304 = por %p302, %p303
    %s305 = ssub.s32 %s19, %s26
    %p306 = scmp.eq.s32.totalorder %s305, 0
    %s308 = sadd.s32 %s307, 1
    %s309 = scalar_select %p306, %s307, %s308
    %p312 = pneg %p306
    %p313 = scmp.eq.s32.totalorder %s19, 1
    %p314 = por %p312, %p313
    %p315 = scmp.ne.s32.totalorder %s307, %s310
    %p316 = scmp.eq.s32.totalorder %s19, 0
    %p317 = por %p315, %p316
    %p318 = scmp.ne.s32.totalorder %s307, %s310
    %p319 = scmp.eq.s32.totalorder %s24, 1
    %p320 = por %p318, %p319
    %p321 = scmp.ne.s32.totalorder %s310, %s311
    %p322 = scmp.eq.s32.totalorder %s24, 0
    %p323 = por %p321, %p322
    %p324 = scmp.ne.s32.totalorder %s310, %s311
    %p325 = scmp.eq.s32.totalorder %s25, 1
    %p326 = por %p324, %p325
    %p328 = scmp.ne.s32.totalorder %s311, %s327
    %p329 = scmp.eq.s32.totalorder %s25, 0
    %p330 = por %p328, %p329
    %p331 = scmp.le.s32.totalorder 1, %s19
    %p332 = scmp.lt.s32.totalorder %s19, 3
    %p333 = pnand %p331, %p332
    %p334 = pneg %p333
    // Predicated region
    $region9: #{vit_encoder_forward.5} parent=5 // pred_check
      _
    $region10: #{vit_encoder_forward.5} parent=5 // pred_check_branch
      %336 = sbr.rel (%p333) target = $region12
    $region11: #{vit_encoder_forward.5} parent=5 // pred_region
      %s337 = ssub.s32 %s19, 1
      // Predicated region
      $region13: #{vit_encoder_forward.5} parent=11 // pred_check
        %p338 = pneg %p66
      $region14: #{vit_encoder_forward.5} parent=11 // pred_check_branch
        %340 = sbr.rel (%p338) target = $region16
      $region15: #{vit_encoder_forward.5} parent=11 // pred_region
        _
      $region16: #{vit_encoder_forward.5} parent=11 // pred_fallthru
        _
      // Predicated region
      $region17: #{vit_encoder_forward.5} parent=11 // pred_check
        %p341 = pneg %p87
      $region18: #{vit_encoder_forward.5} parent=11 // pred_check_branch
        %343 = sbr.rel (%p341) target = $region20
      $region19: #{vit_encoder_forward.5} parent=11 // pred_region
        _
      $region20: #{vit_encoder_forward.5} parent=11 // pred_fallthru
        _
      // Predicated region
      $region21: #{vit_encoder_forward.5} parent=11 // pred_check
        %p344 = pneg %p108
      $region22: #{vit_encoder_forward.5} parent=11 // pred_check_branch
        %346 = sbr.rel (%p344) target = $region24
      $region23: #{vit_encoder_forward.5} parent=11 // pred_region
        _
      $region24: #{vit_encoder_forward.5} parent=11 // pred_fallthru
        _
      // Predicated region
      $region25: #{vit_encoder_forward.5} parent=11 // pred_check
        %p347 = pneg %p129
      $region26: #{vit_encoder_forward.5} parent=11 // pred_check_branch
        %349 = sbr.rel (%p347) target = $region28
      $region27: #{vit_encoder_forward.5} parent=11 // pred_region
        _
      $region28: #{vit_encoder_forward.5} parent=11 // pred_fallthru
        _
      // Predicated region
      $region29: #{vit_encoder_forward.5} parent=11 // pred_check
        %p350 = pneg %p150
      $region30: #{vit_encoder_forward.5} parent=11 // pred_check_branch
        %352 = sbr.rel (%p350) target = $region32
      $region31: #{vit_encoder_forward.5} parent=11 // pred_region
        _
      $region32: #{vit_encoder_forward.5} parent=11 // pred_fallthru
        _
      // Predicated region
      $region33: #{vit_encoder_forward.5} parent=11 // pred_check
        %p353 = pneg %p171
      $region34: #{vit_encoder_forward.5} parent=11 // pred_check_branch
        %355 = sbr.rel (%p353) target = $region36
      $region35: #{vit_encoder_forward.5} parent=11 // pred_region
        _
      $region36: #{vit_encoder_forward.5} parent=11 // pred_fallthru
        _
      // Predicated region
      $region37: #{vit_encoder_forward.5} parent=11 // pred_check
        %p356 = pneg %p192
      $region38: #{vit_encoder_forward.5} parent=11 // pred_check_branch
        %358 = sbr.rel (%p356) target = $region40
      $region39: #{vit_encoder_forward.5} parent=11 // pred_region
        _
      $region40: #{vit_encoder_forward.5} parent=11 // pred_fallthru
        _
      // Predicated region
      $region41: #{vit_encoder_forward.5} parent=11 // pred_check
        %p359 = pneg %p213
      $region42: #{vit_encoder_forward.5} parent=11 // pred_check_branch
        %361 = sbr.rel (%p359) target = $region44
      $region43: #{vit_encoder_forward.5} parent=11 // pred_region
        _
      $region44: #{vit_encoder_forward.5} parent=11 // pred_fallthru
        _
      // Predicated region
      $region45: #{vit_encoder_forward.5} parent=11 // pred_check
        %p362 = pneg %p234
      $region46: #{vit_encoder_forward.5} parent=11 // pred_check_branch
        %364 = sbr.rel (%p362) target = $region48
      $region47: #{vit_encoder_forward.5} parent=11 // pred_region
        _
      $region48: #{vit_encoder_forward.5} parent=11 // pred_fallthru
        _
      // Predicated region
      $region49: #{vit_encoder_forward.5} parent=11 // pred_check
        %p365 = pneg %p255
      $region50: #{vit_encoder_forward.5} parent=11 // pred_check_branch
        %367 = sbr.rel (%p365) target = $region52
      $region51: #{vit_encoder_forward.5} parent=11 // pred_region
        _
      $region52: #{vit_encoder_forward.5} parent=11 // pred_fallthru
        _
      // Predicated region
      $region53: #{vit_encoder_forward.5} parent=11 // pred_check
        %p368 = pneg %p276
      $region54: #{vit_encoder_forward.5} parent=11 // pred_check_branch
        %370 = sbr.rel (%p368) target = $region56
      $region55: #{vit_encoder_forward.5} parent=11 // pred_region
        _
      $region56: #{vit_encoder_forward.5} parent=11 // pred_fallthru
        _
      // Predicated region
      $region57: #{vit_encoder_forward.5} parent=11 // pred_check
        %p371 = pneg %p297
      $region58: #{vit_encoder_forward.5} parent=11 // pred_check_branch
        %373 = sbr.rel (%p371) target = $region60
      $region59: #{vit_encoder_forward.5} parent=11 // pred_region
        _
      $region60: #{vit_encoder_forward.5} parent=11 // pred_fallthru
        _
    $region12: #{vit_encoder_forward.5} parent=5 // pred_fallthru
      _
    %p374 = scmp.lt.s32.totalorder %s19, 2
    // Predicated region
    $region61: #{vit_encoder_forward.5} parent=5 // pred_check
      %p375 = pneg %p374
    $region62: #{vit_encoder_forward.5} parent=5 // pred_check_branch
      %377 = sbr.rel (%p375) target = $region64
    $region63: #{vit_encoder_forward.5} parent=5 // pred_region
      // Predicated region
      $region65: #{vit_encoder_forward.5} parent=63 // pred_check
        %p378 = pneg %p39
      $region66: #{vit_encoder_forward.5} parent=63 // pred_check_branch
        %380 = sbr.rel (%p378) target = $region68
      $region67: #{vit_encoder_forward.5} parent=63 // pred_region
        %p381 = scmp.lt.s32.totalorder %s19, 1
        %s382 = scalar_select %p381, %s19, 1
        %s383 = smul.addr %s382, 4
        %s384 = scalar_lea.vmem %s0, %s383
      $region68: #{vit_encoder_forward.5} parent=63 // pred_fallthru
        _
    $region64: #{vit_encoder_forward.5} parent=5 // pred_fallthru
      _
    %p385 = scmp.le.s32.totalorder 1, %s19
    %p386 = scmp.lt.s32.totalorder %s19, 3
    %p387 = pnand %p385, %p386
    %p388 = pneg %p387
    // Predicated region
    $region69: #{vit_encoder_forward.5} parent=5 // pred_check
      _
    $region70: #{vit_encoder_forward.5} parent=5 // pred_check_branch
      %390 = sbr.rel (%p387) target = $region72
    $region71: #{vit_encoder_forward.5} parent=5 // pred_region
      %s391 = ssub.s32 %s19, 1
      %p392 = scmp.lt.s32.totalorder %s24, 1
      %s393 = scalar_select %p392, %s24, 1
      %s394 = smul.addr %s393, 4
      %s395 = scalar_lea.vmem %s0, %s394
      %p396 = pneg %p45
      %p397 = pneg %p42
      %p398 = pneg %p66
      %p399 = pneg %p63
      %p400 = pneg %p87
      %p401 = pneg %p84
      %p402 = pneg %p108
      %p403 = pneg %p105
      %p404 = pneg %p129
      %p405 = pneg %p126
      %p406 = pneg %p150
      %p407 = pneg %p147
      %p408 = pneg %p171
      %p409 = pneg %p168
      %p410 = pneg %p192
      %p411 = pneg %p189
      %p412 = pneg %p213
      %p413 = pneg %p210
      %p414 = pneg %p234
      %p415 = pneg %p231
      %p416 = pneg %p255
      %p417 = pneg %p252
      %p418 = pneg %p276
      %p419 = pneg %p273
      %p420 = pneg %p297
      %p421 = pneg %p294
      %p422 = pneg %p323
      %p423 = pneg %p320
      %p424 = scmp.lt.s32.totalorder %s24, 1
      %s425 = scalar_select %p424, %s24, 1
      %s426 = smul.addr %s425, 4
      %s427 = scalar_lea.vmem %s13, %s426
      %p428 = scmp.lt.s32.totalorder %s24, 1
      %s429 = scalar_select %p428, %s24, 1
      %s430 = smul.addr %s429, 4
      %s431 = scalar_lea.vmem %s0, %s430
      %p432 = scmp.lt.s32.totalorder %s24, 1
      %s433 = scalar_select %p432, %s24, 1
      %s434 = smul.addr %s433, 4
      %s435 = scalar_lea.vmem %s13, %s434
      %v437 = vld [vmem:[%s431] sm:$0xf]
      %v438 = vunpack.c.l.bf16 %v437
      %v439 = vld [vmem:[%s1] sm:$0x1]
      %v440 = vld [vmem:[%s2] sm:$0x1]
      %vm441 = vcmask 261120
      %v442 = vsel %vm441, %v438, 0.0
      %443 = vadd.xlane.f32.xlu0 %v442
      %v444 = vpop.xlane.xlu0 %443
      %v445 = vrcp.pop 32.0
      %v446 = vmul.f32 %v444, %v445
      %v447 = vsub.f32 %v438, %v446
      %v448 = vmul.f32 %v447, %v447
      %v449 = vsel %vm441, %v448, 0.0
      %450 = vadd.xlane.f32.xlu0 %v449
      %v451 = vpop.xlane.xlu0 %450
      %v452 = vmul.f32 %v451, %v445
      %v453 = vadd.f32 %v452, 1e-12
      %v454 = vrsqrt.pop %v453
      %v455 = vmul.f32 %v447, %v454
      %v457 = vlaneseq
      %v458 = vshrl.u32 %v457, 7
      %v459 = vsub.s32 0, %v458
      %v460 = vrot.slane %v439, %v459
      %v462 = vmul.f32 %v455, %v460
      %v464 = vlaneseq
      %v465 = vshrl.u32 %v464, 7
      %v466 = vsub.s32 0, %v465
      %v467 = vrot.slane %v440, %v466
      %v469 = vadd.f32 %v462, %v467
      %v470 = vpack.c.bf16 %v469, %v469
      %v471 = vld [vmem:[%s3] sm:$0xf]
      %v472 = vld [vmem:[%s3 + $0x4] sm:$0xf]
      %v473 = vld [vmem:[%s3 + $0x8] sm:$0xf]
      %v474 = vld [vmem:[%s3 + $0xc] sm:$0xf]
      %v475 = vld [vmem:[%s4] sm:$0x1]
      %v477 = vlaneseq
      %v478 = vshrl.u32 %v477, 7
      %v479 = vsub.s32 0, %v478
      %v480 = vrot.slane %v475, %v479
      %v486 = vunpack.c.l.b16 %v471
      %v487 = vunpack.c.l.b16 %v472
      %v488 = vunpack.c.l.b16 %v473
      %v489 = vunpack.c.l.b16 %v474
      %v490 = vpack.c.b16 %v487, %v486
      %v491 = vpack.c.b16 %v489, %v488
      %v495 = vsel %vm441, %v470, 0
      %497 = vmatprep.subr.bf16.mxu0 0
      %498 = vmatpush1.bf16.msra.mxu0 0
      %499 = vmatprep.subr.bf16.mxu0 0
      %500 = vmatpush1.bf16.msra.mxu0 0
      %501 = vmatprep.subr.bf16.mxu0 0
      %502 = vmatpush1.bf16.msra.mxu0 0
      %503 = vmatprep.subr.bf16.mxu0 0
      %504 = vmatpush1.bf16.msra.mxu0 0
      %505 = vmatprep.subr.bf16.mxu0 0
      %506 = vmatpush1.bf16.msra.mxu0 0
      %507 = vmatprep.subr.bf16.mxu0 0
      %508 = vmatpush1.bf16.msra.mxu0 0
      %509 = vmatprep.subr.bf16.mxu0 0
      %510 = vmatpush1.bf16.msra.mxu0 %v491
      %511 = vmatprep.subr.bf16.mxu0 0
      %512 = vmatpush1.bf16.msra.mxu0 %v490
      %513 = vmatprep.subr.bf16.mxu0 0
      %514 = vmatpush2.bf16.msra.mxu0 0
      %515 = vmatprep.subr.bf16.mxu0 0
      %516 = vmatpush2.bf16.msra.mxu0 0
      %517 = vmatprep.subr.bf16.mxu0 0
      %518 = vmatpush2.bf16.msra.mxu0 0
      %519 = vmatprep.subr.bf16.mxu0 0
      %520 = vmatpush2.bf16.msra.mxu0 0
      %521 = vmatprep.subr.bf16.mxu0 0
      %522 = vmatpush2.bf16.msra.mxu0 0
      %523 = vmatprep.subr.bf16.mxu0 0
      %524 = vmatpush2.bf16.msra.mxu0 0
      %525 = vmatprep.subr.bf16.mxu0 0
      %526 = vmatpush2.bf16.msra.mxu0 0
      %527 = vmatprep.subr.bf16.mxu0 0
      %528 = vmatpush2.bf16.msra.mxu0 0
      %529 = vmatprep.mubr.bf16.mxu0 0
      %530 = vmatmul.mubr.bf16.gmra.mxu0 %v495
      %v531 = vpop.f32.mrf.mxu0
      %v532 = vadd.f32 %v480, %v531
      %v533 = vpop.f32.mrf.mxu0
      %v534 = vpop.f32.mrf.mxu0
      %v535 = vpop.f32.mrf.mxu0
      %536 = vdwg.mxu0
      %v537 = vlaneseq
      %v538 = vand.u32 %v537, 127
      %vm539 = vcmp.lt.s32.totalorder %v538, 5
      %v540 = vld [vmem:[%s5] sm:$0xf]
      %v541 = vld [vmem:[%s5 + $0x4] sm:$0xf]
      %v542 = vld [vmem:[%s5 + $0x8] sm:$0xf]
      %v543 = vld [vmem:[%s5 + $0xc] sm:$0xf]
      %v544 = vld [vmem:[%s6] sm:$0x1]
      %v546 = vlaneseq
      %v547 = vshrl.u32 %v546, 7
      %v548 = vsub.s32 0, %v547
      %v549 = vrot.slane %v544, %v548
      %v551 = vadd.f32 %v549, %v438
      %v552 = vpack.c.bf16 %v532, %v532
      %554 = vrot.lane.b32.xlu0 %v552, 96
      %v555 = vpop.permute.xlu0 %554
      %vm556 = vcmask 130048
      %v558 = vsel %vm556, %v552, 0
      %v561 = vsel %vm556, %v555, 0
      %563 = vmatprep.subr.bf16.mxu0 0
      %564 = vmatpush1.bf16.xpose.msra.mxu0 0
      %565 = vmatprep.subr.bf16.mxu0 0
      %566 = vmatpush1.bf16.xpose.msra.mxu0 0
      %567 = vmatprep.subr.bf16.mxu0 0
      %568 = vmatpush1.bf16.xpose.msra.mxu0 0
      %569 = vmatprep.subr.bf16.mxu0 0
      %570 = vmatpush1.bf16.xpose.msra.mxu0 0
      %571 = vmatprep.subr.bf16.mxu0 0
      %572 = vmatpush1.bf16.xpose.msra.mxu0 0
      %573 = vmatprep.subr.bf16.mxu0 0
      %574 = vmatpush1.bf16.xpose.msra.mxu0 0
      %575 = vmatprep.subr.bf16.mxu0 0
      %576 = vmatpush1.bf16.xpose.msra.mxu0 0
      %577 = vmatprep.subr.bf16.mxu0 0
      %578 = vmatpush1.bf16.xpose.msra.mxu0 %v561
      %579 = vmatprep.subr.bf16.mxu0 0
      %580 = vmatpush2.bf16.xpose.msra.mxu0 0
      %581 = vmatprep.subr.bf16.mxu0 0
      %582 = vmatpush2.bf16.xpose.msra.mxu0 0
      %583 = vmatprep.subr.bf16.mxu0 0
      %584 = vmatpush2.bf16.xpose.msra.mxu0 0
      %585 = vmatprep.subr.bf16.mxu0 0
      %586 = vmatpush2.bf16.xpose.msra.mxu0 0
      %587 = vmatprep.subr.bf16.mxu0 0
      %588 = vmatpush2.bf16.xpose.msra.mxu0 0
      %589 = vmatprep.subr.bf16.mxu0 0
      %590 = vmatpush2.bf16.xpose.msra.mxu0 0
      %591 = vmatprep.subr.bf16.mxu0 0
      %592 = vmatpush2.bf16.xpose.msra.mxu0 0
      %593 = vmatprep.subr.bf16.mxu0 0
      %594 = vmatpush2.bf16.xpose.msra.mxu0 0
      %595 = vmatprep.mubr.bf16.mxu0 0
      %596 = vmatmul.mubr.bf16.gmra.mxu0 %v558
      %v597 = vpop.f32.mrf.mxu0
      %v598 = vadd.f32 0.0, %v597
      %v599 = vpop.f32.mrf.mxu0
      %v600 = vpop.f32.mrf.mxu0
      %v601 = vpop.f32.mrf.mxu0
      %602 = vdwg.mxu0
      %v603 = vmul.f32 %v598, 0.25
      %v604 = vsel %vm539, %v603, -1e+30
      %vm605 = vcmask 64512
      %v606 = vsel %vm605, %v604, -inf
      %607 = vmax.xlane.f32.xlu0 %v606
      %v608 = vpop.xlane.xlu0 %607
      %v609 = vsub.f32 %v604, %v608
      %v610 = vmul.f32 %v609, 1.442695
      %v611 = vpow.pop %v610
      %v612 = vsel %vm605, %v611, 0.0
      %613 = vadd.xlane.f32.xlu0 %v612
      %v614 = vpop.xlane.xlu0 %613
      %v615 = vrcp.pop %v614
      %v616 = vmul.f32 %v611, %v615
      %v617 = vpack.c.bf16 %v616, %v616
      %618 = vrot.lane.b32.xlu0 %v552, 64
      %v619 = vpop.permute.xlu0 %618
      %v621 = vsel %vm605, %v617, 0
      %vm623 = vcmask 1043456
      %v625 = vsel %vm623, %v619, 0
      %627 = vmatprep.subr.bf16.mxu0 0
      %628 = vmatpush1.bf16.msra.mxu0 0
      %629 = vmatprep.subr.bf16.mxu0 0
      %630 = vmatpush1.bf16.msra.mxu0 0
      %631 = vmatprep.subr.bf16.mxu0 0
      %632 = vmatpush1.bf16.msra.mxu0 0
      %633 = vmatprep.subr.bf16.mxu0 0
      %634 = vmatpush1.bf16.msra.mxu0 0
      %635 = vmatprep.subr.bf16.mxu0 0
      %636 = vmatpush1.bf16.msra.mxu0 0
      %637 = vmatprep.subr.bf16.mxu0 0
      %638 = vmatpush1.bf16.msra.mxu0 0
      %639 = vmatprep.subr.bf16.mxu0 0
      %640 = vmatpush1.bf16.msra.mxu0 0
      %641 = vmatprep.subr.bf16.mxu0 0
      %642 = vmatpush1.bf16.msra.mxu0 %v625
      %643 = vmatprep.subr.bf16.mxu0 0
      %644 = vmatpush2.bf16.msra.mxu0 0
      %645 = vmatprep.subr.bf16.mxu0 0
      %646 = vmatpush2.bf16.msra.mxu0 0
      %647 = vmatprep.subr.bf16.mxu0 0
      %648 = vmatpush2.bf16.msra.mxu0 0
      %649 = vmatprep.subr.bf16.mxu0 0
      %650 = vmatpush2.bf16.msra.mxu0 0
      %651 = vmatprep.subr.bf16.mxu0 0
      %652 = vmatpush2.bf16.msra.mxu0 0
      %653 = vmatprep.subr.bf16.mxu0 0
      %654 = vmatpush2.bf16.msra.mxu0 0
      %655 = vmatprep.subr.bf16.mxu0 0
      %656 = vmatpush2.bf16.msra.mxu0 0
      %657 = vmatprep.subr.bf16.mxu0 0
      %658 = vmatpush2.bf16.msra.mxu0 0
      %659 = vmatprep.mubr.bf16.mxu0 0
      %660 = vmatmul.mubr.bf16.gmra.mxu0 %v621
      %v661 = vpop.f32.mrf.mxu0
      %v662 = vadd.f32 0.0, %v661
      %v663 = vpop.f32.mrf.mxu0
      %v664 = vpop.f32.mrf.mxu0
      %v665 = vpop.f32.mrf.mxu0
      %666 = vdwg.mxu0
      %v667 = vpack.c.bf16 %v662, %v662
      %v670 = vunpack.c.l.b16 %v540
      %v671 = vunpack.c.l.b16 %v541
      %v672 = vpack.c.b16 %v671, %v670
      %v675 = vsel %vm556, %v667, 0
      %677 = vmatprep.subr.bf16.mxu0 0
      %678 = vmatpush1.bf16.msra.mxu0 0
      %679 = vmatprep.subr.bf16.mxu0 0
      %680 = vmatpush1.bf16.msra.mxu0 0
      %681 = vmatprep.subr.bf16.mxu0 0
      %682 = vmatpush1.bf16.msra.mxu0 0
      %683 = vmatprep.subr.bf16.mxu0 0
      %684 = vmatpush1.bf16.msra.mxu0 0
      %685 = vmatprep.subr.bf16.mxu0 0
      %686 = vmatpush1.bf16.msra.mxu0 0
      %687 = vmatprep.subr.bf16.mxu0 0
      %688 = vmatpush1.bf16.msra.mxu0 0
      %689 = vmatprep.subr.bf16.mxu0 0
      %690 = vmatpush1.bf16.msra.mxu0 0
      %691 = vmatprep.subr.bf16.mxu0 0
      %692 = vmatpush1.bf16.msra.mxu0 %v672
      %693 = vmatprep.subr.bf16.mxu0 0
      %694 = vmatpush2.bf16.msra.mxu0 0
      %695 = vmatprep.subr.bf16.mxu0 0
      %696 = vmatpush2.bf16.msra.mxu0 0
      %697 = vmatprep.subr.bf16.mxu0 0
      %698 = vmatpush2.bf16.msra.mxu0 0
      %699 = vmatprep.subr.bf16.mxu0 0
      %700 = vmatpush2.bf16.msra.mxu0 0
      %701 = vmatprep.subr.bf16.mxu0 0
      %702 = vmatpush2.bf16.msra.mxu0 0
      %703 = vmatprep.subr.bf16.mxu0 0
      %704 = vmatpush2.bf16.msra.mxu0 0
      %705 = vmatprep.subr.bf16.mxu0 0
      %706 = vmatpush2.bf16.msra.mxu0 0
      %707 = vmatprep.subr.bf16.mxu0 0
      %708 = vmatpush2.bf16.msra.mxu0 0
      %709 = vmatprep.mubr.bf16.mxu0 0
      %710 = vmatmul.mubr.bf16.gmra.mxu0 %v675
      %v711 = vpop.f32.mrf.mxu0
      %v712 = vadd.f32 0.0, %v711
      %v713 = vpop.f32.mrf.mxu0
      %v714 = vpop.f32.mrf.mxu0
      %v715 = vpop.f32.mrf.mxu0
      %716 = vdwg.mxu0
      %v717 = vadd.f32 %v551, %v712
      %718 = vrot.lane.b32.xlu0 %v552, 112
      %v719 = vpop.permute.xlu0 %718
      %720 = vrot.lane.b32.xlu0 %v552, 80
      %v721 = vpop.permute.xlu0 %720
      %v723 = vsel %vm556, %v719, 0
      %v726 = vsel %vm556, %v721, 0
      %728 = vmatprep.subr.bf16.mxu0 0
      %729 = vmatpush1.bf16.xpose.msra.mxu0 0
      %730 = vmatprep.subr.bf16.mxu0 0
      %731 = vmatpush1.bf16.xpose.msra.mxu0 0
      %732 = vmatprep.subr.bf16.mxu0 0
      %733 = vmatpush1.bf16.xpose.msra.mxu0 0
      %734 = vmatprep.subr.bf16.mxu0 0
      %735 = vmatpush1.bf16.xpose.msra.mxu0 0
      %736 = vmatprep.subr.bf16.mxu0 0
      %737 = vmatpush1.bf16.xpose.msra.mxu0 0
      %738 = vmatprep.subr.bf16.mxu0 0
      %739 = vmatpush1.bf16.xpose.msra.mxu0 0
      %740 = vmatprep.subr.bf16.mxu0 0
      %741 = vmatpush1.bf16.xpose.msra.mxu0 0
      %742 = vmatprep.subr.bf16.mxu0 0
      %743 = vmatpush1.bf16.xpose.msra.mxu0 %v726
      %744 = vmatprep.subr.bf16.mxu0 0
      %745 = vmatpush2.bf16.xpose.msra.mxu0 0
      %746 = vmatprep.subr.bf16.mxu0 0
      %747 = vmatpush2.bf16.xpose.msra.mxu0 0
      %748 = vmatprep.subr.bf16.mxu0 0
      %749 = vmatpush2.bf16.xpose.msra.mxu0 0
      %750 = vmatprep.subr.bf16.mxu0 0
      %751 = vmatpush2.bf16.xpose.msra.mxu0 0
      %752 = vmatprep.subr.bf16.mxu0 0
      %753 = vmatpush2.bf16.xpose.msra.mxu0 0
      %754 = vmatprep.subr.bf16.mxu0 0
      %755 = vmatpush2.bf16.xpose.msra.mxu0 0
      %756 = vmatprep.subr.bf16.mxu0 0
      %757 = vmatpush2.bf16.xpose.msra.mxu0 0
      %758 = vmatprep.subr.bf16.mxu0 0
      %759 = vmatpush2.bf16.xpose.msra.mxu0 0
      %760 = vmatprep.mubr.bf16.mxu0 0
      %761 = vmatmul.mubr.bf16.gmra.mxu0 %v723
      %v762 = vpop.f32.mrf.mxu0
      %v763 = vadd.f32 0.0, %v762
      %v764 = vpop.f32.mrf.mxu0
      %v765 = vpop.f32.mrf.mxu0
      %v766 = vpop.f32.mrf.mxu0
      %767 = vdwg.mxu0
      %v768 = vmul.f32 %v763, 0.25
      %v769 = vsel %vm539, %v768, -1e+30
      %v770 = vsel %vm605, %v769, -inf
      %771 = vmax.xlane.f32.xlu0 %v770
      %v772 = vpop.xlane.xlu0 %771
      %v773 = vsub.f32 %v769, %v772
      %v774 = vmul.f32 %v773, 1.442695
      %v775 = vpow.pop %v774
      %v776 = vsel %vm605, %v775, 0.0
      %777 = vadd.xlane.f32.xlu0 %v776
      %v778 = vpop.xlane.xlu0 %777
      %v779 = vrcp.pop %v778
      %v780 = vmul.f32 %v775, %v779
      %v781 = vpack.c.bf16 %v780, %v780
      %782 = vrot.lane.b32.xlu0 %v552, 48
      %v783 = vpop.permute.xlu0 %782
      %v785 = vsel %vm605, %v781, 0
      %v788 = vsel %vm623, %v783, 0
      %790 = vmatprep.subr.bf16.mxu0 0
      %791 = vmatpush1.bf16.msra.mxu0 0
      %792 = vmatprep.subr.bf16.mxu0 0
      %793 = vmatpush1.bf16.msra.mxu0 0
      %794 = vmatprep.subr.bf16.mxu0 0
      %795 = vmatpush1.bf16.msra.mxu0 0
      %796 = vmatprep.subr.bf16.mxu0 0
      %797 = vmatpush1.bf16.msra.mxu0 0
      %798 = vmatprep.subr.bf16.mxu0 0
      %799 = vmatpush1.bf16.msra.mxu0 0
      %800 = vmatprep.subr.bf16.mxu0 0
      %801 = vmatpush1.bf16.msra.mxu0 0
      %802 = vmatprep.subr.bf16.mxu0 0
      %803 = vmatpush1.bf16.msra.mxu0 0
      %804 = vmatprep.subr.bf16.mxu0 0
      %805 = vmatpush1.bf16.msra.mxu0 %v788
      %806 = vmatprep.subr.bf16.mxu0 0
      %807 = vmatpush2.bf16.msra.mxu0 0
      %808 = vmatprep.subr.bf16.mxu0 0
      %809 = vmatpush2.bf16.msra.mxu0 0
      %810 = vmatprep.subr.bf16.mxu0 0
      %811 = vmatpush2.bf16.msra.mxu0 0
      %812 = vmatprep.subr.bf16.mxu0 0
      %813 = vmatpush2.bf16.msra.mxu0 0
      %814 = vmatprep.subr.bf16.mxu0 0
      %815 = vmatpush2.bf16.msra.mxu0 0
      %816 = vmatprep.subr.bf16.mxu0 0
      %817 = vmatpush2.bf16.msra.mxu0 0
      %818 = vmatprep.subr.bf16.mxu0 0
      %819 = vmatpush2.bf16.msra.mxu0 0
      %820 = vmatprep.subr.bf16.mxu0 0
      %821 = vmatpush2.bf16.msra.mxu0 0
      %822 = vmatprep.mubr.bf16.mxu0 0
      %823 = vmatmul.mubr.bf16.gmra.mxu0 %v785
      %v824 = vpop.f32.mrf.mxu0
      %v825 = vadd.f32 0.0, %v824
      %v826 = vpop.f32.mrf.mxu0
      %v827 = vpop.f32.mrf.mxu0
      %v828 = vpop.f32.mrf.mxu0
      %829 = vdwg.mxu0
      %v830 = vpack.c.bf16 %v825, %v825
      %v833 = vunpack.c.l.b16 %v542
      %v834 = vunpack.c.l.b16 %v543
      %v835 = vpack.c.b16 %v834, %v833
      %v838 = vsel %vm556, %v830, 0
      %840 = vmatprep.subr.bf16.mxu0 0
      %841 = vmatpush1.bf16.msra.mxu0 0
      %842 = vmatprep.subr.bf16.mxu0 0
      %843 = vmatpush1.bf16.msra.mxu0 0
      %844 = vmatprep.subr.bf16.mxu0 0
      %845 = vmatpush1.bf16.msra.mxu0 0
      %846 = vmatprep.subr.bf16.mxu0 0
      %847 = vmatpush1.bf16.msra.mxu0 0
      %848 = vmatprep.subr.bf16.mxu0 0
      %849 = vmatpush1.bf16.msra.mxu0 0
      %850 = vmatprep.subr.bf16.mxu0 0
      %851 = vmatpush1.bf16.msra.mxu0 0
      %852 = vmatprep.subr.bf16.mxu0 0
      %853 = vmatpush1.bf16.msra.mxu0 0
      %854 = vmatprep.subr.bf16.mxu0 0
      %855 = vmatpush1.bf16.msra.mxu0 %v835
      %856 = vmatprep.subr.bf16.mxu0 0
      %857 = vmatpush2.bf16.msra.mxu0 0
      %858 = vmatprep.subr.bf16.mxu0 0
      %859 = vmatpush2.bf16.msra.mxu0 0
      %860 = vmatprep.subr.bf16.mxu0 0
      %861 = vmatpush2.bf16.msra.mxu0 0
      %862 = vmatprep.subr.bf16.mxu0 0
      %863 = vmatpush2.bf16.msra.mxu0 0
      %864 = vmatprep.subr.bf16.mxu0 0
      %865 = vmatpush2.bf16.msra.mxu0 0
      %866 = vmatprep.subr.bf16.mxu0 0
      %867 = vmatpush2.bf16.msra.mxu0 0
      %868 = vmatprep.subr.bf16.mxu0 0
      %869 = vmatpush2.bf16.msra.mxu0 0
      %870 = vmatprep.subr.bf16.mxu0 0
      %871 = vmatpush2.bf16.msra.mxu0 0
      %872 = vmatprep.mubr.bf16.mxu0 0
      %873 = vmatmul.mubr.bf16.gmra.mxu0 %v838
      %v874 = vpop.f32.mrf.mxu0
      %v875 = vadd.f32 0.0, %v874
      %v876 = vpop.f32.mrf.mxu0
      %v877 = vpop.f32.mrf.mxu0
      %v878 = vpop.f32.mrf.mxu0
      %879 = vdwg.mxu0
      %v880 = vadd.f32 %v717, %v875
      %v881 = vld [vmem:[%s7] sm:$0x1]
      %v882 = vld [vmem:[%s8] sm:$0x1]
      %v883 = vsel %vm441, %v880, 0.0
      %884 = vadd.xlane.f32.xlu0 %v883
      %v885 = vpop.xlane.xlu0 %884
      %v886 = vmul.f32 %v885, %v445
      %v887 = vsub.f32 %v880, %v886
      %v888 = vmul.f32 %v887, %v887
      %v889 = vsel %vm441, %v888, 0.0
      %890 = vadd.xlane.f32.xlu0 %v889
      %v891 = vpop.xlane.xlu0 %890
      %v892 = vmul.f32 %v891, %v445
      %v893 = vadd.f32 %v892, 1e-12
      %v894 = vrsqrt.pop %v893
      %v895 = vmul.f32 %v887, %v894
      %v897 = vlaneseq
      %v898 = vshrl.u32 %v897, 7
      %v899 = vsub.s32 0, %v898
      %v900 = vrot.slane %v881, %v899
      %v902 = vmul.f32 %v895, %v900
      %v904 = vlaneseq
      %v905 = vshrl.u32 %v904, 7
      %v906 = vsub.s32 0, %v905
      %v907 = vrot.slane %v882, %v906
      %v909 = vadd.f32 %v902, %v907
      %v910 = vpack.c.bf16 %v909, %v909
      %v911 = vld [vmem:[%s9] sm:$0xf]
      %v912 = vld [vmem:[%s9 + $0x4] sm:$0xf]
      %v913 = vld [vmem:[%s9 + $0x8] sm:$0xf]
      %v914 = vld [vmem:[%s9 + $0xc] sm:$0xf]
      %v915 = vld [vmem:[%s10] sm:$0x1]
      %v917 = vlaneseq
      %v918 = vshrl.u32 %v917, 7
      %v919 = vsub.s32 0, %v918
      %v920 = vrot.slane %v915, %v919
      %v926 = vunpack.c.l.b16 %v911
      %v927 = vunpack.c.l.b16 %v912
      %v928 = vunpack.c.l.b16 %v913
      %v929 = vunpack.c.l.b16 %v914
      %v930 = vpack.c.b16 %v927, %v926
      %v931 = vpack.c.b16 %v929, %v928
      %v935 = vsel %vm441, %v910, 0
      %937 = vmatprep.subr.bf16.mxu0 0
      %938 = vmatpush1.bf16.msra.mxu0 0
      %939 = vmatprep.subr.bf16.mxu0 0
      %940 = vmatpush1.bf16.msra.mxu0 0
      %941 = vmatprep.subr.bf16.mxu0 0
      %942 = vmatpush1.bf16.msra.mxu0 0
      %943 = vmatprep.subr.bf16.mxu0 0
      %944 = vmatpush1.bf16.msra.mxu0 0
      %945 = vmatprep.subr.bf16.mxu0 0
      %946 = vmatpush1.bf16.msra.mxu0 0
      %947 = vmatprep.subr.bf16.mxu0 0
      %948 = vmatpush1.bf16.msra.mxu0 0
      %949 = vmatprep.subr.bf16.mxu0 0
      %950 = vmatpush1.bf16.msra.mxu0 %v931
      %951 = vmatprep.subr.bf16.mxu0 0
      %952 = vmatpush1.bf16.msra.mxu0 %v930
      %953 = vmatprep.subr.bf16.mxu0 0
      %954 = vmatpush2.bf16.msra.mxu0 0
      %955 = vmatprep.subr.bf16.mxu0 0
      %956 = vmatpush2.bf16.msra.mxu0 0
      %957 = vmatprep.subr.bf16.mxu0 0
      %958 = vmatpush2.bf16.msra.mxu0 0
      %959 = vmatprep.subr.bf16.mxu0 0
      %960 = vmatpush2.bf16.msra.mxu0 0
      %961 = vmatprep.subr.bf16.mxu0 0
      %962 = vmatpush2.bf16.msra.mxu0 0
      %963 = vmatprep.subr.bf16.mxu0 0
      %964 = vmatpush2.bf16.msra.mxu0 0
      %965 = vmatprep.subr.bf16.mxu0 0
      %966 = vmatpush2.bf16.msra.mxu0 0
      %967 = vmatprep.subr.bf16.mxu0 0
      %968 = vmatpush2.bf16.msra.mxu0 0
      %969 = vmatprep.mubr.bf16.mxu0 0
      %970 = vmatmul.mubr.bf16.gmra.mxu0 %v935
      %v971 = vpop.f32.mrf.mxu0
      %v972 = vadd.f32 %v920, %v971
      %v973 = vpop.f32.mrf.mxu0
      %v974 = vpop.f32.mrf.mxu0
      %v975 = vpop.f32.mrf.mxu0
      %976 = vdwg.mxu0
      %v977 = vmul.f32 %v972, 0.5
      %v978 = vmul.f32 %v972, 0.70710677
      %v979 = verf.f32.pop %v978
      %v980 = vadd.f32 %v979, 1.0
      %v981 = vmul.f32 %v977, %v980
      %v982 = vpack.c.bf16 %v981, %v981
      %v983 = vld [vmem:[%s11] sm:$0xf]
      %v984 = vld [vmem:[%s11 + $0x4] sm:$0xf]
      %v985 = vld [vmem:[%s11 + $0x8] sm:$0xf]
      %v986 = vld [vmem:[%s11 + $0xc] sm:$0xf]
      %v987 = vld [vmem:[%s11 + $0x10] sm:$0xf]
      %v988 = vld [vmem:[%s11 + $0x14] sm:$0xf]
      %v989 = vld [vmem:[%s11 + $0x18] sm:$0xf]
      %v990 = vld [vmem:[%s11 + $0x1c] sm:$0xf]
      %v991 = vld [vmem:[%s12] sm:$0x1]
      %v993 = vlaneseq
      %v994 = vshrl.u32 %v993, 7
      %v995 = vsub.s32 0, %v994
      %v996 = vrot.slane %v991, %v995
      %v1006 = vunpack.c.l.b16 %v983
      %v1007 = vunpack.c.l.b16 %v984
      %v1008 = vunpack.c.l.b16 %v985
      %v1009 = vunpack.c.l.b16 %v986
      %v1010 = vunpack.c.l.b16 %v987
      %v1011 = vunpack.c.l.b16 %v988
      %v1012 = vunpack.c.l.b16 %v989
      %v1013 = vunpack.c.l.b16 %v990
      %v1014 = vpack.c.b16 %v1007, %v1006
      %v1015 = vpack.c.b16 %v1009, %v1008
      %v1016 = vpack.c.b16 %v1011, %v1010
      %v1017 = vpack.c.b16 %v1013, %v1012
      %vm1022 = vcmask 523264
      %v1024 = vsel %vm1022, %v982, 0
      %1026 = vmatprep.subr.bf16.mxu0 0
      %1027 = vmatpush1.bf16.msra.mxu0 0
      %1028 = vmatprep.subr.bf16.mxu0 0
      %1029 = vmatpush1.bf16.msra.mxu0 0
      %1030 = vmatprep.subr.bf16.mxu0 0
      %1031 = vmatpush1.bf16.msra.mxu0 0
      %1032 = vmatprep.subr.bf16.mxu0 0
      %1033 = vmatpush1.bf16.msra.mxu0 0
      %1034 = vmatprep.subr.bf16.mxu0 0
      %1035 = vmatpush1.bf16.msra.mxu0 %v1017
      %1036 = vmatprep.subr.bf16.mxu0 0
      %1037 = vmatpush1.bf16.msra.mxu0 %v1016
      %1038 = vmatprep.subr.bf16.mxu0 0
      %1039 = vmatpush1.bf16.msra.mxu0 %v1015
      %1040 = vmatprep.subr.bf16.mxu0 0
      %1041 = vmatpush1.bf16.msra.mxu0 %v1014
      %1042 = vmatprep.subr.bf16.mxu0 0
      %1043 = vmatpush2.bf16.msra.mxu0 0
      %1044 = vmatprep.subr.bf16.mxu0 0
      %1045 = vmatpush2.bf16.msra.mxu0 0
      %1046 = vmatprep.subr.bf16.mxu0 0
      %1047 = vmatpush2.bf16.msra.mxu0 0
      %1048 = vmatprep.subr.bf16.mxu0 0
      %1049 = vmatpush2.bf16.msra.mxu0 0
      %1050 = vmatprep.subr.bf16.mxu0 0
      %1051 = vmatpush2.bf16.msra.mxu0 0
      %1052 = vmatprep.subr.bf16.mxu0 0
      %1053 = vmatpush2.bf16.msra.mxu0 0
      %1054 = vmatprep.subr.bf16.mxu0 0
      %1055 = vmatpush2.bf16.msra.mxu0 0
      %1056 = vmatprep.subr.bf16.mxu0 0
      %1057 = vmatpush2.bf16.msra.mxu0 0
      %1058 = vmatprep.mubr.bf16.mxu0 0
      %1059 = vmatmul.mubr.bf16.gmra.mxu0 %v1024
      %v1060 = vpop.f32.mrf.mxu0
      %v1061 = vadd.f32 %v996, %v1060
      %v1062 = vpop.f32.mrf.mxu0
      %v1063 = vpop.f32.mrf.mxu0
      %v1064 = vpop.f32.mrf.mxu0
      %1065 = vdwg.mxu0
      %v1066 = vadd.f32 %v1061, %v880
      %v1067 = vpack.c.bf16 %v1066, %v1066
      %vm1068 = vcmask 257024
      %1069 = vst.msk [vmem:[%s435] sm:$0xf] %vm1068, %v1067
      %p1070 = scmp.lt.s32.totalorder %s24, 1
      %s1071 = scalar_select %p1070, %s24, 1
      %s1072 = smul.addr %s1071, 4
      %s1073 = scalar_lea.vmem %s13, %s1072
      // Predicated region
      $region73: #{vit_encoder_forward.5} parent=71 // pred_check
        %p1074 = pneg %p320
      $region74: #{vit_encoder_forward.5} parent=71 // pred_check_branch
        %1076 = sbr.rel (%p1074) target = $region76
      $region75: #{vit_encoder_forward.5} parent=71 // pred_region
        _
      $region76: #{vit_encoder_forward.5} parent=71 // pred_fallthru
        _
    $region72: #{vit_encoder_forward.5} parent=5 // pred_fallthru
      _
    %p1077 = scmp.le.s32.totalorder 2, %s19
    // Predicated region
    $region77: #{vit_encoder_forward.5} parent=5 // pred_check
      %p1078 = pneg %p1077
    $region78: #{vit_encoder_forward.5} parent=5 // pred_check_branch
      %1080 = sbr.rel (%p1078) target = $region80
    $region79: #{vit_encoder_forward.5} parent=5 // pred_region
      %s1081 = ssub.s32 %s19, 2
      // Predicated region
      $region81: #{vit_encoder_forward.5} parent=79 // pred_check
        %p1082 = pneg %p326
      $region82: #{vit_encoder_forward.5} parent=79 // pred_check_branch
        %1084 = sbr.rel (%p1082) target = $region84
      $region83: #{vit_encoder_forward.5} parent=79 // pred_region
        %p1085 = scmp.lt.s32.totalorder %s25, 1
        %s1086 = scalar_select %p1085, %s25, 1
        %s1087 = smul.addr %s1086, 4
        %s1088 = scalar_lea.vmem %s13, %s1087
      $region84: #{vit_encoder_forward.5} parent=79 // pred_fallthru
        _
    $region80: #{vit_encoder_forward.5} parent=5 // pred_fallthru
      _
  $region6: #{vit_encoder_forward.5} parent=0 // loop_footer
    %s23 = sadd.s32 1, %s19
  $region7: #{vit_encoder_forward.5} parent=0 // loop_footer_branch
    %18 = sbr.rel target = $region3
  $region8: #{vit_encoder_forward.5} parent=0 // loop_exit
    _

</llo_original>
